<compile_context>
chip_gen: v5e
topology: v5e:2x2
jax: 0.10.0
libtpu: 0.0.40
codegen_flags: <defaults>
</compile_context>

<pallas_src>
import jax
import jax.numpy as jnp
import numpy as np
from jax.experimental import pallas as pl
from jax.experimental.pallas import tpu as pltpu

# ----------------------------- config (small) -----------------------------
HIDDEN_SIZE = 32
HEADS = 4
LAYERS = 2
FEEDFORWARD_SIZE = 64
CONTINUOUS_FEATURES = ["c0", "c1", "c2"]
CATEGORICAL_FEATURES = ["k0", "k1"]
CATEGORICAL_SIZES = [5, 7]
TARGET_CLASSES = ["a", "b", "c"]

N_FEATURES = len(CONTINUOUS_FEATURES) + len(CATEGORICAL_FEATURES)   # 5
N_CLASSES = len(TARGET_CLASSES)                                      # 3
HEAD_DIM = HIDDEN_SIZE // HEADS                                      # 8

BATCH = 2
SEQ = 8

N_TOK = BATCH * SEQ                        # 16 tokens
KSLOTS = BATCH * HEADS * SEQ               # 64 flattened (batch, head, key) slots
GROUPS = BATCH * HEADS                     # 8 per-head softmax groups
FEAT_PAD = 8                               # features padded 5 -> 8
FPH = FEAT_PAD * HIDDEN_SIZE               # 256 packed feature lanes
SLAB_W = 256                               # weight-slab lane width
QKV_W = 128                                # fused q|k|v lane width (96 used)
OUT_W = 128                                # lane-dense padded logits width
OUT_ROWS = 8                               # sublane-dense padded output rows
NEG = -1e9


# ---------------------------- weight slab packing ---------------------------
class _SlabPacker:
    """Packs small f32 params/constants into one (rows, 256) slab; 8-aligned rows."""

    def __init__(self, width=SLAB_W):
        self.width = width
        self.blocks = []
        self.off = 0
        self.offsets = {}

    def add(self, name, arr):
        arr = np.asarray(arr, np.float32)
        if arr.ndim == 1:
            arr = arr[None, :]
        r, c = arr.shape
        assert c <= self.width
        rp = ((r + 7) // 8) * 8
        blk = np.zeros((rp, self.width), np.float32)
        blk[:r, :c] = arr
        self.offsets[name] = self.off
        self.blocks.append(blk)
        self.off += rp

    def finalize(self):
        return jnp.asarray(np.concatenate(self.blocks, axis=0))


def pack_params(params):
    H, FF, F, C, L = HIDDEN_SIZE, FEEDFORWARD_SIZE, N_FEATURES, N_CLASSES, LAYERS
    NH, DH, S = HEADS, HEAD_DIM, SEQ
    scale = 1.0 / np.sqrt(DH)                 # folded into Wq / bq
    pk = _SlabPacker()

    # VSN weight, contraction-major: (packed feature lane, gate) = (256, 8).
    vsn_w = np.zeros((FPH, FEAT_PAD), np.float32)
    vsn_w[:F * H, :F] = np.asarray(params["vsn_w"], np.float32).reshape(F * H, F)
    pk.add("vsn_w", vsn_w)

    # ---- constant masks baked into the slab (no runtime iota/compare) ----
    exp_f = np.zeros((FEAT_PAD, FPH), np.float32)       # gate -> feature lanes
    for f in range(FEAT_PAD):
        exp_f[f, f * H:(f + 1) * H] = 1.0
    pk.add("exp_f", exp_f)

    red_f = np.zeros((FPH, H), np.float32)              # feature lanes -> hidden
    red_f[np.arange(FPH), np.arange(FPH) % H] = 1.0
    pk.add("red_f", red_f)

    m = np.arange(KSLOTS)                               # key-slot index
    b_m, h_m = m // (NH * S), (m // S) % NH
    s_m = m % S
    n = np.arange(N_TOK)                                # token index
    b_n, s_n = n // S, n % S

    e_tok = ((b_m[:, None] == b_n[None, :])
             & (s_m[:, None] == s_n[None, :])).astype(np.float32)   # (64, 16)
    pk.add("E", e_tok)
    pk.add("ET", e_tok.T)                                            # (16, 64)
    pk.add("HM", (np.arange(H)[None, :] // DH
                  == h_m[:, None]).astype(np.float32))               # (64, 32)
    gs = (m[:, None] // S == np.arange(GROUPS)[None, :]).astype(np.float32)
    pk.add("GS", gs)                                                 # (64, 8)
    pk.add("GE", gs.T)                                               # (8, 64)
    pk.add("SB", (b_n[:, None] == b_m[None, :]).astype(np.float32))  # (16, 64)
    sbp = np.zeros((OUT_ROWS, N_TOK), np.float32)
    sbp[b_n, n] = 1.0
    pk.add("SBp", sbp)                                               # (8, 16)

    # Bias rows: row0 = VSN gate bias (padded gates get -1e9),
    #            row1 = classifier bias over 128 padded logit lanes.
    gvec = np.zeros((2, SLAB_W), np.float32)
    gvec[0, F:FEAT_PAD] = NEG
    gvec[0, :F] = np.asarray(params["vsn_b"])
    gvec[1, :OUT_W] = NEG
    gvec[1, :C] = np.asarray(params["bc"])
    pk.add("gvec", gvec)

    wc = np.zeros((H, OUT_W), np.float32)               # classifier weight
    wc[:, :C] = np.asarray(params["wc"])
    pk.add("wc", wc)

    for l in range(L):
        wqkv = np.zeros((H, QKV_W), np.float32)         # fused q|k|v weight
        wqkv[:, 0:H] = np.asarray(params["wq"][l]) * scale
        wqkv[:, H:2 * H] = np.asarray(params["wk"][l])
        wqkv[:, 2 * H:3 * H] = np.asarray(params["wv"][l])
        pk.add(f"wqkv{l}", wqkv)
        pk.add(f"wo{l}", params["wo"][l])
        pk.add(f"w1{l}", params["w1"][l])
        pk.add(f"w2{l}", params["w2"][l])

        vec = np.zeros((8, SLAB_W), np.float32)
        vec[0, 0:H] = np.asarray(params["bq"][l]) * scale   # fused q|k|v bias
        vec[0, H:2 * H] = np.asarray(params["bk"][l])
        vec[0, 2 * H:3 * H] = np.asarray(params["bv"][l])
        vec[1, :H] = np.asarray(params["bo"][l])
        vec[2, :FF] = np.asarray(params["b1"][l])
        vec[3, :H] = np.asarray(params["b2"][l])
        vec[4, :H] = np.asarray(params["ln1g"][l])
        vec[5, :H] = np.asarray(params["ln1b"][l])
        vec[6, :H] = np.asarray(params["ln2g"][l])
        vec[7, :H] = np.asarray(params["ln2b"][l])
        pk.add(f"vec{l}", vec)

    return pk.finalize(), pk.offsets


# ------------------------------ Pallas kernel ------------------------------
def _make_kernel(off):
    H, FF, L = HIDDEN_SIZE, FEEDFORWARD_SIZE, LAYERS
    N, KS, G = N_TOK, KSLOTS, GROUPS
    f32 = jnp.float32

    def kernel(x_ref, mask_ref, slab_ref, out_ref):
        def mat(name, r, c):               # static (r, c) slab slice
            o = off[name]
            return slab_ref[o:o + r, 0:c]

        def row(name, i, c):               # single (1, c) parameter row
            o = off[name] + i
            return slab_ref[o:o + 1, 0:c]

        def recip(v):                      # EUP approx reciprocal, NaN-safe
            return pl.reciprocal(jnp.maximum(v, 1e-30), approx=True)

        def layer_norm(z, g, b):
            mu = jnp.mean(z, axis=-1, keepdims=True)
            var = jnp.mean(jnp.square(z - mu), axis=-1, keepdims=True)
            return (z - mu) * jax.lax.rsqrt(var + 1e-5) * g + b

        x = x_ref[...]                     # (16, 256) packed feature embeds
        maskf = mask_ref[...]              # (1, 16)   1.0 valid / 0.0 pad

        # ---- constants baked in the slab (loaded once) ----
        e_tok = mat("E", KS, N)            # (64, 16) token -> key-slot expand
        hm = mat("HM", KS, H)              # (64, 32) head-channel mask
        gs = mat("GS", KS, G)              # (64,  8) key-slot -> group sum
        ge = mat("GE", G, KS)              # ( 8, 64) group -> key-slot expand
        sb = mat("SB", N, KS)              # (16, 64) same-batch mask
        et = mat("ET", N, KS)              # (16, 64) key-slot -> token map
        sbp = mat("SBp", OUT_ROWS, N)      # ( 8, 16) pooling batch selector

        # ---- mask-derived attention bias / pooling weights (lane-dense) ----
        maskrep = jnp.dot(maskf, et, preferred_element_type=f32)     # (1, 64)
        kbias = (sb * maskrep - 1.0) * (-NEG)                        # (16, 64)
        m_pool = sbp * maskf                                         # (8, 16)

        # ---- variable-selection network (3 lane-dense matmuls) ----
        sel = jnp.dot(x, mat("vsn_w", FPH, FEAT_PAD),
                      preferred_element_type=f32) + row("gvec", 0, FEAT_PAD)
        gates = jax.nn.softmax(sel, axis=-1)                         # (16, 8)
        gexp = jnp.dot(gates, mat("exp_f", FEAT_PAD, FPH),
                       preferred_element_type=f32)                   # (16, 256)
        h = jnp.dot(gexp * x, mat("red_f", FPH, H),
                    preferred_element_type=f32)                      # (16, 32)

        # ------------------- transformer encoder layers ---------------------
        for l in range(L):
            # fused q|k|v projection (Wq, bq pre-scaled by 1/sqrt(head_dim))
            qkv = jnp.dot(h, mat(f"wqkv{l}", H, QKV_W),
                          preferred_element_type=f32) + row(f"vec{l}", 0, QKV_W)
            q = qkv[:, 0:H]                                          # (16, 32)
            kv = qkv[:, H:3 * H]                                     # (16, 64)

            kv_exp = jnp.dot(e_tok, kv, preferred_element_type=f32)  # (64, 64)
            kb = kv_exp[:, 0:H] * hm                                 # (64, 32)
            vb = kv_exp[:, H:2 * H] * hm                             # (64, 32)

            s = jnp.einsum("nc,mc->nm", q, kb,
                           preferred_element_type=f32) + kbias       # (16, 64)
            s = s - jnp.max(s, axis=-1, keepdims=True)
            ex = jnp.exp(s)
            den = jnp.dot(ex, gs, preferred_element_type=f32)        # (16, 8)
            inv = jnp.dot(recip(den), ge, preferred_element_type=f32)  # (16,64)
            p = ex * inv                                   # per-head softmax
            ctx = jnp.dot(p, vb, preferred_element_type=f32)         # (16, 32)

            attn = jnp.dot(ctx, mat(f"wo{l}", H, H),
                           preferred_element_type=f32) + row(f"vec{l}", 1, H)
            h = layer_norm(h + attn, row(f"vec{l}", 4, H), row(f"vec{l}", 5, H))
            ff = jnp.maximum(
                jnp.dot(h, mat(f"w1{l}", H, FF),
                        preferred_element_type=f32) + row(f"vec{l}", 2, FF), 0.0)
            ff = jnp.dot(ff, mat(f"w2{l}", FF, H),
                         preferred_element_type=f32) + row(f"vec{l}", 3, H)
            h = layer_norm(h + ff, row(f"vec{l}", 6, H), row(f"vec{l}", 7, H))

        # ---------------- masked mean pooling (rows B..7 are pad) -----------
        num = jnp.dot(m_pool, h, preferred_element_type=f32)         # (8, 32)
        mden = jnp.maximum(jnp.sum(m_pool, axis=-1, keepdims=True), 1.0)
        pooled = num * recip(mden)

        # ------------- classifier (lane-dense padded softmax) ---------------
        logits = jnp.dot(pooled, mat("wc", H, OUT_W),
                         preferred_element_type=f32) + row("gvec", 1, OUT_W)
        out_ref[...] = jax.nn.softmax(logits, axis=-1)               # (8, 128)

    return kernel


def build_forward(offsets):
    kernel = _make_kernel(offsets)
    vmem = pltpu.MemorySpace.VMEM

    @jax.jit
    def forward(x, mask_flat, slab):
        # Single invocation, whole batch (workload is latency-bound; <2 MiB VMEM).
        probs = pl.pallas_call(
            kernel,
            out_shape=jax.ShapeDtypeStruct((OUT_ROWS, OUT_W), jnp.float32),
            in_specs=[pl.BlockSpec(memory_space=vmem),
                      pl.BlockSpec(memory_space=vmem),
                      pl.BlockSpec(memory_space=vmem)],
            out_specs=pl.BlockSpec(memory_space=vmem),
        )(x, mask_flat, slab)
        return probs[:BATCH, :N_CLASSES]

    return forward


# ------------------------------ JAX glue / params ---------------------------
def build_features(categorical, continuous, mask, params):
    """Embedding lookups (gathers) stay in plain JAX; pack features lane-dense."""
    feats = []
    for i, emb in enumerate(params["cat_emb"]):
        feats.append(emb[categorical[..., i]])                          # (B,S,H)
    for j in range(len(CONTINUOUS_FEATURES)):
        feats.append(continuous[..., j:j + 1] * params["cont_w"][j]
                     + params["cont_b"][j])                             # (B,S,H)
    feats = jnp.stack(feats, axis=2).astype(jnp.float32)                # (B,S,F,H)
    x = jnp.pad(feats, ((0, 0), (0, 0), (0, FEAT_PAD - N_FEATURES), (0, 0)))
    x = x.reshape(BATCH * SEQ, FPH)                                     # (16, 256)
    mask_flat = mask.astype(jnp.float32).reshape(1, BATCH * SEQ)        # (1, 16)
    return feats, x, mask_flat


def init_params(key):
    H, L, FF, F, C = HIDDEN_SIZE, LAYERS, FEEDFORWARD_SIZE, N_FEATURES, N_CLASSES
    ks = iter(jax.random.split(key, 64))

    def nrm(shape, scale=0.1):
        return scale * jax.random.normal(next(ks), shape, jnp.float32)

    return {
        "cat_emb": [nrm((sz, H)) for sz in CATEGORICAL_SIZES],
        "cont_w": nrm((len(CONTINUOUS_FEATURES), H)),
        "cont_b": nrm((len(CONTINUOUS_FEATURES), H)),
        "vsn_w": nrm((F, H, F)),
        "vsn_b": nrm((F,)),
        "wq": nrm((L, H, H)), "bq": nrm((L, H)),
        "wk": nrm((L, H, H)), "bk": nrm((L, H)),
        "wv": nrm((L, H, H)), "bv": nrm((L, H)),
        "wo": nrm((L, H, H)), "bo": nrm((L, H)),
        "ln1g": jnp.ones((L, H), jnp.float32),
        "ln1b": jnp.zeros((L, H), jnp.float32),
        "w1": nrm((L, H, FF)), "b1": nrm((L, FF)),
        "w2": nrm((L, FF, H)), "b2": nrm((L, H)),
        "ln2g": jnp.ones((L, H), jnp.float32),
        "ln2b": jnp.zeros((L, H), jnp.float32),
        "wc": nrm((H, C)),
        "bc": nrm((C,)),
    }


# ----------------------------- pure-JAX reference ----------------------------
def _ln(x, g, b, eps=1e-5):
    mu = jnp.mean(x, axis=-1, keepdims=True)
    var = jnp.mean(jnp.square(x - mu), axis=-1, keepdims=True)
    return (x - mu) * jax.lax.rsqrt(var + eps) * g + b


def reference_forward(feats, mask, params):
    B, S, F, H = feats.shape
    nh, dh = HEADS, H // HEADS
    maskf = mask.astype(jnp.float32)

    sel = jnp.einsum("bsfh,fhg->bsg", feats, params["vsn_w"]) + params["vsn_b"]
    gates = jax.nn.softmax(sel, axis=-1)
    h = jnp.einsum("bsf,bsfh->bsh", gates, feats)

    bias = jnp.where(mask, 0.0, NEG)[:, None, None, :]                  # (B,1,1,S)
    for l in range(LAYERS):
        q = h @ params["wq"][l] + params["bq"][l]
        k = h @ params["wk"][l] + params["bk"][l]
        v = h @ params["wv"][l] + params["bv"][l]

        def split(t):
            return t.reshape(B, S, nh, dh).transpose(0, 2, 1, 3)

        s = jnp.einsum("bhqd,bhkd->bhqk", split(q), split(k)) / np.sqrt(dh) + bias
        p = jax.nn.softmax(s, axis=-1)
        ctx = jnp.einsum("bhqk,bhkd->bhqd", p, split(v))
        ctx = ctx.transpose(0, 2, 1, 3).reshape(B, S, H)
        attn = ctx @ params["wo"][l] + params["bo"][l]
        h = _ln(h + attn, params["ln1g"][l], params["ln1b"][l])
        ff = jax.nn.relu(h @ params["w1"][l] + params["b1"][l])
        ff = ff @ params["w2"][l] + params["b2"][l]
        h = _ln(h + ff, params["ln2g"][l], params["ln2b"][l])

    num = jnp.sum(h * maskf[:, :, None], axis=1)
    den = jnp.maximum(jnp.sum(maskf, axis=1, keepdims=True), 1.0)
    pooled = num / den
    logits = pooled @ params["wc"] + params["bc"]
    return jax.nn.softmax(logits, axis=-1)


# ---------------------------------- main ------------------------------------
if __name__ == "__main__":
    key = jax.random.PRNGKey(0)
    k_cat0, k_cat1, k_cont, k_par = jax.random.split(key, 4)

    categorical = jnp.stack(
        [jax.random.randint(k_cat0, (BATCH, SEQ), 0, CATEGORICAL_SIZES[0]),
         jax.random.randint(k_cat1, (BATCH, SEQ), 0, CATEGORICAL_SIZES[1])],
        axis=-1)                                                # (B, S, 2) int32
    continuous = jax.random.normal(
        k_cont, (BATCH, SEQ, len(CONTINUOUS_FEATURES)), jnp.float32)   # (B, S, 3)
    mask = jnp.array([[1, 1, 1, 1, 1, 1, 1, 1],
                      [1, 1, 1, 1, 1, 0, 0, 0]], dtype=jnp.bool_)      # (B, S)

    params = init_params(k_par)
    slab, offsets = pack_params(params)
    forward = build_forward(offsets)

    feats, x, mask_flat = build_features(categorical, continuous, mask, params)
    out = jax.block_until_ready(forward(x, mask_flat, slab))           # (B, C)

    ref = jax.block_until_ready(reference_forward(feats, mask, params))

    assert out.shape == (BATCH, N_CLASSES)
    assert np.allclose(np.asarray(out), np.asarray(ref), atol=1e-3, rtol=1e-3)
    assert np.allclose(np.asarray(out).sum(-1), 1.0, atol=1e-4)

    print("KERNEL_OK")
</pallas_src>

<mosaic_0001>
module attributes {stable_mosaic.version = 11 : i64} {
  func.func @kernel(%arg0: memref<16x256xf32, #tpu.memory_space<vmem>>, %arg1: memref<1x16xf32, #tpu.memory_space<vmem>>, %arg2: memref<1136x256xf32, #tpu.memory_space<vmem>>, %arg3: memref<8x128xf32, #tpu.memory_space<vmem>>) attributes {dimension_semantics = [], scalar_prefetch = 0 : i64, scratch_operands = 0 : i64, tpu.core_type = #tpu.core_type<tc>} {
    %c0 = arith.constant 0 : index
    %c0_0 = arith.constant 0 : index
    %0 = vector.load %arg0[%c0, %c0_0] : memref<16x256xf32, #tpu.memory_space<vmem>>, vector<16x256xf32>
    %c0_1 = arith.constant 0 : index
    %c0_2 = arith.constant 0 : index
    %1 = vector.load %arg1[%c0_1, %c0_2] : memref<1x16xf32, #tpu.memory_space<vmem>>, vector<1x16xf32>
    %c520 = arith.constant 520 : index
    %c0_3 = arith.constant 0 : index
    %2 = vector.load %arg2[%c520, %c0_3] : memref<1136x256xf32, #tpu.memory_space<vmem>>, vector<64x16xf32>
    %c600 = arith.constant 600 : index
    %c0_4 = arith.constant 0 : index
    %3 = vector.load %arg2[%c600, %c0_4] : memref<1136x256xf32, #tpu.memory_space<vmem>>, vector<64x32xf32>
    %c664 = arith.constant 664 : index
    %c0_5 = arith.constant 0 : index
    %4 = vector.load %arg2[%c664, %c0_5] : memref<1136x256xf32, #tpu.memory_space<vmem>>, vector<64x8xf32>
    %c728 = arith.constant 728 : index
    %c0_6 = arith.constant 0 : index
    %5 = vector.load %arg2[%c728, %c0_6] : memref<1136x256xf32, #tpu.memory_space<vmem>>, vector<8x64xf32>
    %c736 = arith.constant 736 : index
    %c0_7 = arith.constant 0 : index
    %6 = vector.load %arg2[%c736, %c0_7] : memref<1136x256xf32, #tpu.memory_space<vmem>>, vector<16x64xf32>
    %c584 = arith.constant 584 : index
    %c0_8 = arith.constant 0 : index
    %7 = vector.load %arg2[%c584, %c0_8] : memref<1136x256xf32, #tpu.memory_space<vmem>>, vector<16x64xf32>
    %c752 = arith.constant 752 : index
    %c0_9 = arith.constant 0 : index
    %8 = vector.load %arg2[%c752, %c0_9] : memref<1136x256xf32, #tpu.memory_space<vmem>>, vector<8x16xf32>
    %cst = arith.constant dense<0.000000e+00> : vector<1x64xf32>
    %9 = tpu.matmul %1, %7, %cst {dimension_numbers = #tpu.dot_dimension_numbers<[1], [0], [0], [1], [0, 0, 1, 1], [], []>} : vector<1x16xf32>, vector<16x64xf32>, vector<1x64xf32> -> vector<1x64xf32>
    %10 = vector.broadcast %9 : vector<1x64xf32> to vector<16x64xf32>
    %11 = arith.mulf %6, %10 : vector<16x64xf32>
    %cst_10 = arith.constant 1.000000e+00 : f32
    %12 = vector.broadcast %cst_10 : f32 to vector<16x64xf32>
    %13 = arith.subf %11, %12 : vector<16x64xf32>
    %cst_11 = arith.constant 1.000000e+09 : f32
    %14 = vector.broadcast %cst_11 : f32 to vector<16x64xf32>
    %15 = arith.mulf %13, %14 : vector<16x64xf32>
    %16 = vector.broadcast %1 : vector<1x16xf32> to vector<8x16xf32>
    %17 = arith.mulf %8, %16 : vector<8x16xf32>
    %c0_12 = arith.constant 0 : index
    %c0_13 = arith.constant 0 : index
    %18 = vector.load %arg2[%c0_12, %c0_13] : memref<1136x256xf32, #tpu.memory_space<vmem>>, vector<256x8xf32>
    %cst_14 = arith.constant dense<0.000000e+00> : vector<16x8xf32>
    %19 = tpu.matmul %0, %18, %cst_14 {dimension_numbers = #tpu.dot_dimension_numbers<[1], [0], [0], [1], [0, 0, 1, 1], [], []>} : vector<16x256xf32>, vector<256x8xf32>, vector<16x8xf32> -> vector<16x8xf32>
    %c760 = arith.constant 760 : index
    %c0_15 = arith.constant 0 : index
    %20 = vector.load %arg2[%c760, %c0_15] : memref<1136x256xf32, #tpu.memory_space<vmem>>, vector<1x8xf32>
    %21 = vector.broadcast %20 : vector<1x8xf32> to vector<16x8xf32>
    %22 = arith.addf %19, %21 : vector<16x8xf32>
    %cst_16 = arith.constant dense<0xFF800000> : vector<16xf32>
    %23 = vector.multi_reduction <maximumf>, %22, %cst_16 [1] : vector<16x8xf32> to vector<16xf32>
    %cst_17 = arith.constant 0xFF800000 : f32
    %24 = vector.broadcast %cst_17 : f32 to vector<16xf32>
    %25 = arith.maximumf %24, %23 : vector<16xf32>
    %26 = vector.shape_cast %25 : vector<16xf32> to vector<16x1xf32>
    %27 = vector.broadcast %26 : vector<16x1xf32> to vector<16x8xf32>
    %28 = arith.subf %22, %27 : vector<16x8xf32>
    %29 = math.exp %28 : vector<16x8xf32>
    %cst_18 = arith.constant dense<0.000000e+00> : vector<16xf32>
    %30 = vector.multi_reduction <add>, %29, %cst_18 [1] : vector<16x8xf32> to vector<16xf32>
    %31 = vector.shape_cast %30 : vector<16xf32> to vector<16x1xf32>
    %32 = vector.broadcast %31 : vector<16x1xf32> to vector<16x8xf32>
    %33 = arith.divf %29, %32 : vector<16x8xf32>
    %c256 = arith.constant 256 : index
    %c0_19 = arith.constant 0 : index
    %34 = vector.load %arg2[%c256, %c0_19] : memref<1136x256xf32, #tpu.memory_space<vmem>>, vector<8x256xf32>
    %cst_20 = arith.constant dense<0.000000e+00> : vector<16x256xf32>
    %35 = tpu.matmul %33, %34, %cst_20 {dimension_numbers = #tpu.dot_dimension_numbers<[1], [0], [0], [1], [0, 0, 1, 1], [], []>} : vector<16x8xf32>, vector<8x256xf32>, vector<16x256xf32> -> vector<16x256xf32>
    %36 = arith.mulf %35, %0 : vector<16x256xf32>
    %c264 = arith.constant 264 : index
    %c0_21 = arith.constant 0 : index
    %37 = vector.load %arg2[%c264, %c0_21] : memref<1136x256xf32, #tpu.memory_space<vmem>>, vector<256x32xf32>
    %cst_22 = arith.constant dense<0.000000e+00> : vector<16x32xf32>
    %38 = tpu.matmul %36, %37, %cst_22 {dimension_numbers = #tpu.dot_dimension_numbers<[1], [0], [0], [1], [0, 0, 1, 1], [], []>} : vector<16x256xf32>, vector<256x32xf32>, vector<16x32xf32> -> vector<16x32xf32>
    %c800 = arith.constant 800 : index
    %c0_23 = arith.constant 0 : index
    %39 = vector.load %arg2[%c800, %c0_23] : memref<1136x256xf32, #tpu.memory_space<vmem>>, vector<32x128xf32>
    %cst_24 = arith.constant dense<0.000000e+00> : vector<16x128xf32>
    %40 = tpu.matmul %38, %39, %cst_24 {dimension_numbers = #tpu.dot_dimension_numbers<[1], [0], [0], [1], [0, 0, 1, 1], [], []>} : vector<16x32xf32>, vector<32x128xf32>, vector<16x128xf32> -> vector<16x128xf32>
    %c960 = arith.constant 960 : index
    %c0_25 = arith.constant 0 : index
    %41 = vector.load %arg2[%c960, %c0_25] : memref<1136x256xf32, #tpu.memory_space<vmem>>, vector<1x128xf32>
    %42 = vector.broadcast %41 : vector<1x128xf32> to vector<16x128xf32>
    %43 = arith.addf %40, %42 : vector<16x128xf32>
    %44 = vector.extract_strided_slice %43 {offsets = [0, 0], sizes = [16, 32], strides = [1, 1]} : vector<16x128xf32> to vector<16x32xf32>
    %45 = vector.extract_strided_slice %43 {offsets = [0, 32], sizes = [16, 64], strides = [1, 1]} : vector<16x128xf32> to vector<16x64xf32>
    %cst_26 = arith.constant dense<0.000000e+00> : vector<64x64xf32>
    %46 = tpu.matmul %2, %45, %cst_26 {dimension_numbers = #tpu.dot_dimension_numbers<[1], [0], [0], [1], [0, 0, 1, 1], [], []>} : vector<64x16xf32>, vector<16x64xf32>, vector<64x64xf32> -> vector<64x64xf32>
    %47 = vector.extract_strided_slice %46 {offsets = [0, 0], sizes = [64, 32], strides = [1, 1]} : vector<64x64xf32> to vector<64x32xf32>
    %48 = arith.mulf %47, %3 : vector<64x32xf32>
    %49 = vector.extract_strided_slice %46 {offsets = [0, 32], sizes = [64, 32], strides = [1, 1]} : vector<64x64xf32> to vector<64x32xf32>
    %50 = arith.mulf %49, %3 : vector<64x32xf32>
    "tpu.trace_start"() <{level = 10 : i32, message = "nc,mc->nm"}> : () -> ()
    %cst_27 = arith.constant dense<0.000000e+00> : vector<16x64xf32>
    %51 = tpu.matmul %44, %48, %cst_27 {dimension_numbers = #tpu.dot_dimension_numbers<[1], [1], [0], [0], [0, 0, 1, 0], [], []>} : vector<16x32xf32>, vector<64x32xf32>, vector<16x64xf32> -> vector<16x64xf32>
    "tpu.trace_stop"() : () -> ()
    %52 = arith.addf %51, %15 : vector<16x64xf32>
    %cst_28 = arith.constant dense<0xFF800000> : vector<16xf32>
    %53 = vector.multi_reduction <maximumf>, %52, %cst_28 [1] : vector<16x64xf32> to vector<16xf32>
    %54 = vector.shape_cast %53 : vector<16xf32> to vector<16x1xf32>
    %55 = vector.broadcast %54 : vector<16x1xf32> to vector<16x64xf32>
    %56 = arith.subf %52, %55 : vector<16x64xf32>
    %57 = math.exp %56 : vector<16x64xf32>
    %cst_29 = arith.constant dense<0.000000e+00> : vector<16x8xf32>
    %58 = tpu.matmul %57, %4, %cst_29 {dimension_numbers = #tpu.dot_dimension_numbers<[1], [0], [0], [1], [0, 0, 1, 1], [], []>} : vector<16x64xf32>, vector<64x8xf32>, vector<16x8xf32> -> vector<16x8xf32>
    %cst_30 = arith.constant 1.000000e-30 : f32
    %59 = vector.broadcast %cst_30 : f32 to vector<16x8xf32>
    %60 = arith.maximumf %58, %59 : vector<16x8xf32>
    %61 = tpu.reciprocal %60 {approx = true} : vector<16x8xf32> -> vector<16x8xf32>
    %cst_31 = arith.constant dense<0.000000e+00> : vector<16x64xf32>
    %62 = tpu.matmul %61, %5, %cst_31 {dimension_numbers = #tpu.dot_dimension_numbers<[1], [0], [0], [1], [0, 0, 1, 1], [], []>} : vector<16x8xf32>, vector<8x64xf32>, vector<16x64xf32> -> vector<16x64xf32>
    %63 = arith.mulf %57, %62 : vector<16x64xf32>
    %cst_32 = arith.constant dense<0.000000e+00> : vector<16x32xf32>
    %64 = tpu.matmul %63, %50, %cst_32 {dimension_numbers = #tpu.dot_dimension_numbers<[1], [0], [0], [1], [0, 0, 1, 1], [], []>} : vector<16x64xf32>, vector<64x32xf32>, vector<16x32xf32> -> vector<16x32xf32>
    %c832 = arith.constant 832 : index
    %c0_33 = arith.constant 0 : index
    %65 = vector.load %arg2[%c832, %c0_33] : memref<1136x256xf32, #tpu.memory_space<vmem>>, vector<32x32xf32>
    %cst_34 = arith.constant dense<0.000000e+00> : vector<16x32xf32>
    %66 = tpu.matmul %64, %65, %cst_34 {dimension_numbers = #tpu.dot_dimension_numbers<[1], [0], [0], [1], [0, 0, 1, 1], [], []>} : vector<16x32xf32>, vector<32x32xf32>, vector<16x32xf32> -> vector<16x32xf32>
    %c961 = arith.constant 961 : index
    %c0_35 = arith.constant 0 : index
    %67 = vector.load %arg2[%c961, %c0_35] : memref<1136x256xf32, #tpu.memory_space<vmem>>, vector<1x32xf32>
    %68 = vector.broadcast %67 : vector<1x32xf32> to vector<16x32xf32>
    %69 = arith.addf %66, %68 : vector<16x32xf32>
    %70 = arith.addf %38, %69 : vector<16x32xf32>
    %c964 = arith.constant 964 : index
    %c0_36 = arith.constant 0 : index
    %71 = vector.load %arg2[%c964, %c0_36] : memref<1136x256xf32, #tpu.memory_space<vmem>>, vector<1x32xf32>
    %c965 = arith.constant 965 : index
    %c0_37 = arith.constant 0 : index
    %72 = vector.load %arg2[%c965, %c0_37] : memref<1136x256xf32, #tpu.memory_space<vmem>>, vector<1x32xf32>
    %cst_38 = arith.constant dense<0.000000e+00> : vector<16xf32>
    %73 = vector.multi_reduction <add>, %70, %cst_38 [1] : vector<16x32xf32> to vector<16xf32>
    %74 = vector.shape_cast %73 : vector<16xf32> to vector<16x1xf32>
    %cst_39 = arith.constant 3.200000e+01 : f32
    %75 = vector.broadcast %cst_39 : f32 to vector<16x1xf32>
    %76 = arith.divf %74, %75 : vector<16x1xf32>
    %77 = vector.broadcast %76 : vector<16x1xf32> to vector<16x32xf32>
    %78 = arith.subf %70, %77 : vector<16x32xf32>
    %79 = arith.mulf %78, %78 : vector<16x32xf32>
    %cst_40 = arith.constant dense<0.000000e+00> : vector<16xf32>
    %80 = vector.multi_reduction <add>, %79, %cst_40 [1] : vector<16x32xf32> to vector<16xf32>
    %81 = vector.shape_cast %80 : vector<16xf32> to vector<16x1xf32>
    %cst_41 = arith.constant 3.200000e+01 : f32
    %82 = vector.broadcast %cst_41 : f32 to vector<16x1xf32>
    %83 = arith.divf %81, %82 : vector<16x1xf32>
    %84 = vector.broadcast %76 : vector<16x1xf32> to vector<16x32xf32>
    %85 = arith.subf %70, %84 : vector<16x32xf32>
    %cst_42 = arith.constant 9.99999974E-6 : f32
    %86 = vector.broadcast %cst_42 : f32 to vector<16x1xf32>
    %87 = arith.addf %83, %86 : vector<16x1xf32>
    %88 = math.rsqrt %87 : vector<16x1xf32>
    %89 = vector.broadcast %88 : vector<16x1xf32> to vector<16x32xf32>
    %90 = arith.mulf %85, %89 : vector<16x32xf32>
    %91 = vector.broadcast %71 : vector<1x32xf32> to vector<16x32xf32>
    %92 = arith.mulf %90, %91 : vector<16x32xf32>
    %93 = vector.broadcast %72 : vector<1x32xf32> to vector<16x32xf32>
    %94 = arith.addf %92, %93 : vector<16x32xf32>
    %c864 = arith.constant 864 : index
    %c0_43 = arith.constant 0 : index
    %95 = vector.load %arg2[%c864, %c0_43] : memref<1136x256xf32, #tpu.memory_space<vmem>>, vector<32x64xf32>
    %cst_44 = arith.constant dense<0.000000e+00> : vector<16x64xf32>
    %96 = tpu.matmul %94, %95, %cst_44 {dimension_numbers = #tpu.dot_dimension_numbers<[1], [0], [0], [1], [0, 0, 1, 1], [], []>} : vector<16x32xf32>, vector<32x64xf32>, vector<16x64xf32> -> vector<16x64xf32>
    %c962 = arith.constant 962 : index
    %c0_45 = arith.constant 0 : index
    %97 = vector.load %arg2[%c962, %c0_45] : memref<1136x256xf32, #tpu.memory_space<vmem>>, vector<1x64xf32>
    %98 = vector.broadcast %97 : vector<1x64xf32> to vector<16x64xf32>
    %99 = arith.addf %96, %98 : vector<16x64xf32>
    %cst_46 = arith.constant 0.000000e+00 : f32
    %100 = vector.broadcast %cst_46 : f32 to vector<16x64xf32>
    %101 = arith.maximumf %99, %100 : vector<16x64xf32>
    %c896 = arith.constant 896 : index
    %c0_47 = arith.constant 0 : index
    %102 = vector.load %arg2[%c896, %c0_47] : memref<1136x256xf32, #tpu.memory_space<vmem>>, vector<64x32xf32>
    %cst_48 = arith.constant dense<0.000000e+00> : vector<16x32xf32>
    %103 = tpu.matmul %101, %102, %cst_48 {dimension_numbers = #tpu.dot_dimension_numbers<[1], [0], [0], [1], [0, 0, 1, 1], [], []>} : vector<16x64xf32>, vector<64x32xf32>, vector<16x32xf32> -> vector<16x32xf32>
    %c963 = arith.constant 963 : index
    %c0_49 = arith.constant 0 : index
    %104 = vector.load %arg2[%c963, %c0_49] : memref<1136x256xf32, #tpu.memory_space<vmem>>, vector<1x32xf32>
    %105 = vector.broadcast %104 : vector<1x32xf32> to vector<16x32xf32>
    %106 = arith.addf %103, %105 : vector<16x32xf32>
    %107 = arith.addf %94, %106 : vector<16x32xf32>
    %c966 = arith.constant 966 : index
    %c0_50 = arith.constant 0 : index
    %108 = vector.load %arg2[%c966, %c0_50] : memref<1136x256xf32, #tpu.memory_space<vmem>>, vector<1x32xf32>
    %c967 = arith.constant 967 : index
    %c0_51 = arith.constant 0 : index
    %109 = vector.load %arg2[%c967, %c0_51] : memref<1136x256xf32, #tpu.memory_space<vmem>>, vector<1x32xf32>
    %cst_52 = arith.constant dense<0.000000e+00> : vector<16xf32>
    %110 = vector.multi_reduction <add>, %107, %cst_52 [1] : vector<16x32xf32> to vector<16xf32>
    %111 = vector.shape_cast %110 : vector<16xf32> to vector<16x1xf32>
    %cst_53 = arith.constant 3.200000e+01 : f32
    %112 = vector.broadcast %cst_53 : f32 to vector<16x1xf32>
    %113 = arith.divf %111, %112 : vector<16x1xf32>
    %114 = vector.broadcast %113 : vector<16x1xf32> to vector<16x32xf32>
    %115 = arith.subf %107, %114 : vector<16x32xf32>
    %116 = arith.mulf %115, %115 : vector<16x32xf32>
    %cst_54 = arith.constant dense<0.000000e+00> : vector<16xf32>
    %117 = vector.multi_reduction <add>, %116, %cst_54 [1] : vector<16x32xf32> to vector<16xf32>
    %118 = vector.shape_cast %117 : vector<16xf32> to vector<16x1xf32>
    %cst_55 = arith.constant 3.200000e+01 : f32
    %119 = vector.broadcast %cst_55 : f32 to vector<16x1xf32>
    %120 = arith.divf %118, %119 : vector<16x1xf32>
    %121 = vector.broadcast %113 : vector<16x1xf32> to vector<16x32xf32>
    %122 = arith.subf %107, %121 : vector<16x32xf32>
    %cst_56 = arith.constant 9.99999974E-6 : f32
    %123 = vector.broadcast %cst_56 : f32 to vector<16x1xf32>
    %124 = arith.addf %120, %123 : vector<16x1xf32>
    %125 = math.rsqrt %124 : vector<16x1xf32>
    %126 = vector.broadcast %125 : vector<16x1xf32> to vector<16x32xf32>
    %127 = arith.mulf %122, %126 : vector<16x32xf32>
    %128 = vector.broadcast %108 : vector<1x32xf32> to vector<16x32xf32>
    %129 = arith.mulf %127, %128 : vector<16x32xf32>
    %130 = vector.broadcast %109 : vector<1x32xf32> to vector<16x32xf32>
    %131 = arith.addf %129, %130 : vector<16x32xf32>
    %c968 = arith.constant 968 : index
    %c0_57 = arith.constant 0 : index
    %132 = vector.load %arg2[%c968, %c0_57] : memref<1136x256xf32, #tpu.memory_space<vmem>>, vector<32x128xf32>
    %cst_58 = arith.constant dense<0.000000e+00> : vector<16x128xf32>
    %133 = tpu.matmul %131, %132, %cst_58 {dimension_numbers = #tpu.dot_dimension_numbers<[1], [0], [0], [1], [0, 0, 1, 1], [], []>} : vector<16x32xf32>, vector<32x128xf32>, vector<16x128xf32> -> vector<16x128xf32>
    %c1128 = arith.constant 1128 : index
    %c0_59 = arith.constant 0 : index
    %134 = vector.load %arg2[%c1128, %c0_59] : memref<1136x256xf32, #tpu.memory_space<vmem>>, vector<1x128xf32>
    %135 = vector.broadcast %134 : vector<1x128xf32> to vector<16x128xf32>
    %136 = arith.addf %133, %135 : vector<16x128xf32>
    %137 = vector.extract_strided_slice %136 {offsets = [0, 0], sizes = [16, 32], strides = [1, 1]} : vector<16x128xf32> to vector<16x32xf32>
    %138 = vector.extract_strided_slice %136 {offsets = [0, 32], sizes = [16, 64], strides = [1, 1]} : vector<16x128xf32> to vector<16x64xf32>
    %cst_60 = arith.constant dense<0.000000e+00> : vector<64x64xf32>
    %139 = tpu.matmul %2, %138, %cst_60 {dimension_numbers = #tpu.dot_dimension_numbers<[1], [0], [0], [1], [0, 0, 1, 1], [], []>} : vector<64x16xf32>, vector<16x64xf32>, vector<64x64xf32> -> vector<64x64xf32>
    %140 = vector.extract_strided_slice %139 {offsets = [0, 0], sizes = [64, 32], strides = [1, 1]} : vector<64x64xf32> to vector<64x32xf32>
    %141 = arith.mulf %140, %3 : vector<64x32xf32>
    %142 = vector.extract_strided_slice %139 {offsets = [0, 32], sizes = [64, 32], strides = [1, 1]} : vector<64x64xf32> to vector<64x32xf32>
    %143 = arith.mulf %142, %3 : vector<64x32xf32>
    "tpu.trace_start"() <{level = 10 : i32, message = "nc,mc->nm"}> : () -> ()
    %cst_61 = arith.constant dense<0.000000e+00> : vector<16x64xf32>
    %144 = tpu.matmul %137, %141, %cst_61 {dimension_numbers = #tpu.dot_dimension_numbers<[1], [1], [0], [0], [0, 0, 1, 0], [], []>} : vector<16x32xf32>, vector<64x32xf32>, vector<16x64xf32> -> vector<16x64xf32>
    "tpu.trace_stop"() : () -> ()
    %145 = arith.addf %144, %15 : vector<16x64xf32>
    %cst_62 = arith.constant dense<0xFF800000> : vector<16xf32>
    %146 = vector.multi_reduction <maximumf>, %145, %cst_62 [1] : vector<16x64xf32> to vector<16xf32>
    %147 = vector.shape_cast %146 : vector<16xf32> to vector<16x1xf32>
    %148 = vector.broadcast %147 : vector<16x1xf32> to vector<16x64xf32>
    %149 = arith.subf %145, %148 : vector<16x64xf32>
    %150 = math.exp %149 : vector<16x64xf32>
    %cst_63 = arith.constant dense<0.000000e+00> : vector<16x8xf32>
    %151 = tpu.matmul %150, %4, %cst_63 {dimension_numbers = #tpu.dot_dimension_numbers<[1], [0], [0], [1], [0, 0, 1, 1], [], []>} : vector<16x64xf32>, vector<64x8xf32>, vector<16x8xf32> -> vector<16x8xf32>
    %cst_64 = arith.constant 1.000000e-30 : f32
    %152 = vector.broadcast %cst_64 : f32 to vector<16x8xf32>
    %153 = arith.maximumf %151, %152 : vector<16x8xf32>
    %154 = tpu.reciprocal %153 {approx = true} : vector<16x8xf32> -> vector<16x8xf32>
    %cst_65 = arith.constant dense<0.000000e+00> : vector<16x64xf32>
    %155 = tpu.matmul %154, %5, %cst_65 {dimension_numbers = #tpu.dot_dimension_numbers<[1], [0], [0], [1], [0, 0, 1, 1], [], []>} : vector<16x8xf32>, vector<8x64xf32>, vector<16x64xf32> -> vector<16x64xf32>
    %156 = arith.mulf %150, %155 : vector<16x64xf32>
    %cst_66 = arith.constant dense<0.000000e+00> : vector<16x32xf32>
    %157 = tpu.matmul %156, %143, %cst_66 {dimension_numbers = #tpu.dot_dimension_numbers<[1], [0], [0], [1], [0, 0, 1, 1], [], []>} : vector<16x64xf32>, vector<64x32xf32>, vector<16x32xf32> -> vector<16x32xf32>
    %c1000 = arith.constant 1000 : index
    %c0_67 = arith.constant 0 : index
    %158 = vector.load %arg2[%c1000, %c0_67] : memref<1136x256xf32, #tpu.memory_space<vmem>>, vector<32x32xf32>
    %cst_68 = arith.constant dense<0.000000e+00> : vector<16x32xf32>
    %159 = tpu.matmul %157, %158, %cst_68 {dimension_numbers = #tpu.dot_dimension_numbers<[1], [0], [0], [1], [0, 0, 1, 1], [], []>} : vector<16x32xf32>, vector<32x32xf32>, vector<16x32xf32> -> vector<16x32xf32>
    %c1129 = arith.constant 1129 : index
    %c0_69 = arith.constant 0 : index
    %160 = vector.load %arg2[%c1129, %c0_69] : memref<1136x256xf32, #tpu.memory_space<vmem>>, vector<1x32xf32>
    %161 = vector.broadcast %160 : vector<1x32xf32> to vector<16x32xf32>
    %162 = arith.addf %159, %161 : vector<16x32xf32>
    %163 = arith.addf %131, %162 : vector<16x32xf32>
    %c1132 = arith.constant 1132 : index
    %c0_70 = arith.constant 0 : index
    %164 = vector.load %arg2[%c1132, %c0_70] : memref<1136x256xf32, #tpu.memory_space<vmem>>, vector<1x32xf32>
    %c1133 = arith.constant 1133 : index
    %c0_71 = arith.constant 0 : index
    %165 = vector.load %arg2[%c1133, %c0_71] : memref<1136x256xf32, #tpu.memory_space<vmem>>, vector<1x32xf32>
    %cst_72 = arith.constant dense<0.000000e+00> : vector<16xf32>
    %166 = vector.multi_reduction <add>, %163, %cst_72 [1] : vector<16x32xf32> to vector<16xf32>
    %167 = vector.shape_cast %166 : vector<16xf32> to vector<16x1xf32>
    %cst_73 = arith.constant 3.200000e+01 : f32
    %168 = vector.broadcast %cst_73 : f32 to vector<16x1xf32>
    %169 = arith.divf %167, %168 : vector<16x1xf32>
    %170 = vector.broadcast %169 : vector<16x1xf32> to vector<16x32xf32>
    %171 = arith.subf %163, %170 : vector<16x32xf32>
    %172 = arith.mulf %171, %171 : vector<16x32xf32>
    %cst_74 = arith.constant dense<0.000000e+00> : vector<16xf32>
    %173 = vector.multi_reduction <add>, %172, %cst_74 [1] : vector<16x32xf32> to vector<16xf32>
    %174 = vector.shape_cast %173 : vector<16xf32> to vector<16x1xf32>
    %cst_75 = arith.constant 3.200000e+01 : f32
    %175 = vector.broadcast %cst_75 : f32 to vector<16x1xf32>
    %176 = arith.divf %174, %175 : vector<16x1xf32>
    %177 = vector.broadcast %169 : vector<16x1xf32> to vector<16x32xf32>
    %178 = arith.subf %163, %177 : vector<16x32xf32>
    %cst_76 = arith.constant 9.99999974E-6 : f32
    %179 = vector.broadcast %cst_76 : f32 to vector<16x1xf32>
    %180 = arith.addf %176, %179 : vector<16x1xf32>
    %181 = math.rsqrt %180 : vector<16x1xf32>
    %182 = vector.broadcast %181 : vector<16x1xf32> to vector<16x32xf32>
    %183 = arith.mulf %178, %182 : vector<16x32xf32>
    %184 = vector.broadcast %164 : vector<1x32xf32> to vector<16x32xf32>
    %185 = arith.mulf %183, %184 : vector<16x32xf32>
    %186 = vector.broadcast %165 : vector<1x32xf32> to vector<16x32xf32>
    %187 = arith.addf %185, %186 : vector<16x32xf32>
    %c1032 = arith.constant 1032 : index
    %c0_77 = arith.constant 0 : index
    %188 = vector.load %arg2[%c1032, %c0_77] : memref<1136x256xf32, #tpu.memory_space<vmem>>, vector<32x64xf32>
    %cst_78 = arith.constant dense<0.000000e+00> : vector<16x64xf32>
    %189 = tpu.matmul %187, %188, %cst_78 {dimension_numbers = #tpu.dot_dimension_numbers<[1], [0], [0], [1], [0, 0, 1, 1], [], []>} : vector<16x32xf32>, vector<32x64xf32>, vector<16x64xf32> -> vector<16x64xf32>
    %c1130 = arith.constant 1130 : index
    %c0_79 = arith.constant 0 : index
    %190 = vector.load %arg2[%c1130, %c0_79] : memref<1136x256xf32, #tpu.memory_space<vmem>>, vector<1x64xf32>
    %191 = vector.broadcast %190 : vector<1x64xf32> to vector<16x64xf32>
    %192 = arith.addf %189, %191 : vector<16x64xf32>
    %cst_80 = arith.constant 0.000000e+00 : f32
    %193 = vector.broadcast %cst_80 : f32 to vector<16x64xf32>
    %194 = arith.maximumf %192, %193 : vector<16x64xf32>
    %c1064 = arith.constant 1064 : index
    %c0_81 = arith.constant 0 : index
    %195 = vector.load %arg2[%c1064, %c0_81] : memref<1136x256xf32, #tpu.memory_space<vmem>>, vector<64x32xf32>
    %cst_82 = arith.constant dense<0.000000e+00> : vector<16x32xf32>
    %196 = tpu.matmul %194, %195, %cst_82 {dimension_numbers = #tpu.dot_dimension_numbers<[1], [0], [0], [1], [0, 0, 1, 1], [], []>} : vector<16x64xf32>, vector<64x32xf32>, vector<16x32xf32> -> vector<16x32xf32>
    %c1131 = arith.constant 1131 : index
    %c0_83 = arith.constant 0 : index
    %197 = vector.load %arg2[%c1131, %c0_83] : memref<1136x256xf32, #tpu.memory_space<vmem>>, vector<1x32xf32>
    %198 = vector.broadcast %197 : vector<1x32xf32> to vector<16x32xf32>
    %199 = arith.addf %196, %198 : vector<16x32xf32>
    %200 = arith.addf %187, %199 : vector<16x32xf32>
    %c1134 = arith.constant 1134 : index
    %c0_84 = arith.constant 0 : index
    %201 = vector.load %arg2[%c1134, %c0_84] : memref<1136x256xf32, #tpu.memory_space<vmem>>, vector<1x32xf32>
    %c1135 = arith.constant 1135 : index
    %c0_85 = arith.constant 0 : index
    %202 = vector.load %arg2[%c1135, %c0_85] : memref<1136x256xf32, #tpu.memory_space<vmem>>, vector<1x32xf32>
    %cst_86 = arith.constant dense<0.000000e+00> : vector<16xf32>
    %203 = vector.multi_reduction <add>, %200, %cst_86 [1] : vector<16x32xf32> to vector<16xf32>
    %204 = vector.shape_cast %203 : vector<16xf32> to vector<16x1xf32>
    %cst_87 = arith.constant 3.200000e+01 : f32
    %205 = vector.broadcast %cst_87 : f32 to vector<16x1xf32>
    %206 = arith.divf %204, %205 : vector<16x1xf32>
    %207 = vector.broadcast %206 : vector<16x1xf32> to vector<16x32xf32>
    %208 = arith.subf %200, %207 : vector<16x32xf32>
    %209 = arith.mulf %208, %208 : vector<16x32xf32>
    %cst_88 = arith.constant dense<0.000000e+00> : vector<16xf32>
    %210 = vector.multi_reduction <add>, %209, %cst_88 [1] : vector<16x32xf32> to vector<16xf32>
    %211 = vector.shape_cast %210 : vector<16xf32> to vector<16x1xf32>
    %cst_89 = arith.constant 3.200000e+01 : f32
    %212 = vector.broadcast %cst_89 : f32 to vector<16x1xf32>
    %213 = arith.divf %211, %212 : vector<16x1xf32>
    %214 = vector.broadcast %206 : vector<16x1xf32> to vector<16x32xf32>
    %215 = arith.subf %200, %214 : vector<16x32xf32>
    %cst_90 = arith.constant 9.99999974E-6 : f32
    %216 = vector.broadcast %cst_90 : f32 to vector<16x1xf32>
    %217 = arith.addf %213, %216 : vector<16x1xf32>
    %218 = math.rsqrt %217 : vector<16x1xf32>
    %219 = vector.broadcast %218 : vector<16x1xf32> to vector<16x32xf32>
    %220 = arith.mulf %215, %219 : vector<16x32xf32>
    %221 = vector.broadcast %201 : vector<1x32xf32> to vector<16x32xf32>
    %222 = arith.mulf %220, %221 : vector<16x32xf32>
    %223 = vector.broadcast %202 : vector<1x32xf32> to vector<16x32xf32>
    %224 = arith.addf %222, %223 : vector<16x32xf32>
    %cst_91 = arith.constant dense<0.000000e+00> : vector<8x32xf32>
    %225 = tpu.matmul %17, %224, %cst_91 {dimension_numbers = #tpu.dot_dimension_numbers<[1], [0], [0], [1], [0, 0, 1, 1], [], []>} : vector<8x16xf32>, vector<16x32xf32>, vector<8x32xf32> -> vector<8x32xf32>
    %cst_92 = arith.constant dense<0.000000e+00> : vector<8xf32>
    %226 = vector.multi_reduction <add>, %17, %cst_92 [1] : vector<8x16xf32> to vector<8xf32>
    %227 = vector.shape_cast %226 : vector<8xf32> to vector<8x1xf32>
    %cst_93 = arith.constant 1.000000e+00 : f32
    %228 = vector.broadcast %cst_93 : f32 to vector<8x1xf32>
    %229 = arith.maximumf %227, %228 : vector<8x1xf32>
    %cst_94 = arith.constant 1.000000e-30 : f32
    %230 = vector.broadcast %cst_94 : f32 to vector<8x1xf32>
    %231 = arith.maximumf %229, %230 : vector<8x1xf32>
    %232 = tpu.reciprocal %231 {approx = true} : vector<8x1xf32> -> vector<8x1xf32>
    %233 = vector.broadcast %232 : vector<8x1xf32> to vector<8x32xf32>
    %234 = arith.mulf %225, %233 : vector<8x32xf32>
    %c768 = arith.constant 768 : index
    %c0_95 = arith.constant 0 : index
    %235 = vector.load %arg2[%c768, %c0_95] : memref<1136x256xf32, #tpu.memory_space<vmem>>, vector<32x128xf32>
    %cst_96 = arith.constant dense<0.000000e+00> : vector<8x128xf32>
    %236 = tpu.matmul %234, %235, %cst_96 {dimension_numbers = #tpu.dot_dimension_numbers<[1], [0], [0], [1], [0, 0, 1, 1], [], []>} : vector<8x32xf32>, vector<32x128xf32>, vector<8x128xf32> -> vector<8x128xf32>
    %c761 = arith.constant 761 : index
    %c0_97 = arith.constant 0 : index
    %237 = vector.load %arg2[%c761, %c0_97] : memref<1136x256xf32, #tpu.memory_space<vmem>>, vector<1x128xf32>
    %238 = vector.broadcast %237 : vector<1x128xf32> to vector<8x128xf32>
    %239 = arith.addf %236, %238 : vector<8x128xf32>
    %cst_98 = arith.constant dense<0xFF800000> : vector<8xf32>
    %240 = vector.multi_reduction <maximumf>, %239, %cst_98 [1] : vector<8x128xf32> to vector<8xf32>
    %cst_99 = arith.constant 0xFF800000 : f32
    %241 = vector.broadcast %cst_99 : f32 to vector<8xf32>
    %242 = arith.maximumf %241, %240 : vector<8xf32>
    %243 = vector.shape_cast %242 : vector<8xf32> to vector<8x1xf32>
    %244 = vector.broadcast %243 : vector<8x1xf32> to vector<8x128xf32>
    %245 = arith.subf %239, %244 : vector<8x128xf32>
    %246 = math.exp %245 : vector<8x128xf32>
    %cst_100 = arith.constant dense<0.000000e+00> : vector<8xf32>
    %247 = vector.multi_reduction <add>, %246, %cst_100 [1] : vector<8x128xf32> to vector<8xf32>
    %248 = vector.shape_cast %247 : vector<8xf32> to vector<8x1xf32>
    %249 = vector.broadcast %248 : vector<8x1xf32> to vector<8x128xf32>
    %250 = arith.divf %246, %249 : vector<8x128xf32>
    %c0_101 = arith.constant 0 : index
    %c0_102 = arith.constant 0 : index
    %251 = vector.load %arg3[%c0_101, %c0_102] : memref<8x128xf32, #tpu.memory_space<vmem>>, vector<8x128xf32>
    tpu.vector_store %arg3[%c0_101, %c0_102], %250 {strides = array<i32>} : memref<8x128xf32, #tpu.memory_space<vmem>>, vector<8x128xf32>,
    return
  }
}

</mosaic_0001>

<llo_original>
// kernel: forward.1
$region0: #{forward.1}
  #allocation0 [shape = 'u32[]', space=smem, size = 0x4, offset = 0x4, fixed_abs, tag = 'smem constant byte address 0x4 - core index']
  #allocation1 [shape = 'u32[72,128]{1,0:T(1,128)}', space=vmem, size = 0x9000, scoped, tag = 'internal scratch']
  %s0 = inlined_call_operand.hbm [shape: f32[16,256], index: 0, kind: input, shape index: {}]
  %s1 = inlined_call_operand.hbm [shape: f32[1,16], index: 1, kind: input, shape index: {}]
  %s2 = inlined_call_operand.hbm [shape: f32[1136,256], index: 2, kind: input, shape index: {}]
  %s3 = inlined_call_operand.vmem [shape: f32[8,128], index: 3, kind: output, shape index: {}]
  %s4 = sld [smem:[#allocation0]]
  $region34: #{forward.1} parent=0
    _
  %s6 = ssub.s32 1, %s4
  %s7 = scalar_select 0, %s6, %s4
  $region1: #{forward.1} parent=0
    #allocation2 [shape = 'u8[16384]{0}', space=vmem, size = 0x4000, scoped, tag = 'input window, operand 0, single buffered']
    #allocation3 [shape = 's32[1]{0}', space=sflag, size = 0x4, scoped, tag = 'scoped memory for forward.1']
    #allocation4 [shape = 'u8[512]{0}', space=vmem, size = 0x400, scoped, tag = 'input window, operand 1, single buffered']
    #allocation5 [shape = 's32[1]{0}', space=sflag, size = 0x4, scoped, tag = 'scoped memory for forward.1']
    #allocation6 [shape = 'u8[1163264]{0}', space=vmem, size = 0x11c000, scoped, tag = 'input window, operand 2, single buffered']
    %8 = vsyncpa [#allocation3], 0
    %9 = vsyncpa [#allocation5], 0
    // Predicated region
    $region2: #{forward.1} parent=1 // pred_check
      _
    $region3: #{forward.1} parent=1 // pred_check_branch
      %11 = sbr.rel (0) target = $region5
    $region4: #{forward.1} parent=1 // pred_region
      %13 = vsyncadd [#allocation3], 0
      %s14 = sshll.u32 %s0, 4
      %s15 = int_to_ptr.hbm [resolvable:$true] %s14
      %s16 = sshll.u32 [#allocation2], 4
      %s17 = int_to_ptr.vmem [resolvable:$true] %s16
      %22 = dma.hbm_to_vmem [thread:$0]  %s15, 512, %s17, [#allocation3], 256, 256, 16
    $region5: #{forward.1} parent=1 // pred_fallthru
      _
    // Predicated region
    $region6: #{forward.1} parent=1 // pred_check
      _
    $region7: #{forward.1} parent=1 // pred_check_branch
      %24 = sbr.rel (0) target = $region9
    $region8: #{forward.1} parent=1 // pred_region
      %26 = vsyncadd [#allocation5], 0
      %s28 = sshll.u32 %s1, 4
      %s29 = int_to_ptr.hbm [resolvable:$true] %s28
      %s30 = sshll.u32 [#allocation4], 4
      %s31 = int_to_ptr.vmem [resolvable:$true] %s30
      %33 = dma.hbm_to_vmem [thread:$0]  %s29, 16, %s31, [#allocation5]
    $region9: #{forward.1} parent=1 // pred_fallthru
      _
    // Predicated region
    $region10: #{forward.1} parent=1 // pred_check
      _
    $region11: #{forward.1} parent=1 // pred_check_branch
      %35 = sbr.rel (0) target = $region13
    $region12: #{forward.1} parent=1 // pred_region
      %37 = vsyncadd [#allocation5], 0
      %s38 = sshll.u32 %s2, 4
      %s39 = int_to_ptr.hbm [resolvable:$true] %s38
      %s40 = sshll.u32 [#allocation6], 4
      %s41 = int_to_ptr.vmem [resolvable:$true] %s40
      %46 = dma.hbm_to_vmem [thread:$0]  %s39, 36352, %s41, [#allocation5], 256, 256, 16
    $region13: #{forward.1} parent=1 // pred_fallthru
      _
    // Predicated region
    $region14: #{forward.1} parent=1 // pred_check
      _
    $region15: #{forward.1} parent=1 // pred_check_branch
      %48 = sbr.rel (0) target = $region17
    $region16: #{forward.1} parent=1 // pred_region
      %50 = dma.done [#allocation3], 512
    $region17: #{forward.1} parent=1 // pred_fallthru
      _
    // Predicated region
    $region18: #{forward.1} parent=1 // pred_check
      _
    $region19: #{forward.1} parent=1 // pred_check_branch
      %52 = sbr.rel (0) target = $region21
    $region20: #{forward.1} parent=1 // pred_region
      %54 = dma.done [#allocation5], 16
    $region21: #{forward.1} parent=1 // pred_fallthru
      _
    // Predicated region
    $region22: #{forward.1} parent=1 // pred_check
      _
    $region23: #{forward.1} parent=1 // pred_check_branch
      %56 = sbr.rel (0) target = $region25
    $region24: #{forward.1} parent=1 // pred_region
      %58 = dma.done [#allocation5], 36352
    $region25: #{forward.1} parent=1 // pred_fallthru
      _
    %v59 = vld [vmem:[#allocation2] sm:$0xff]
    %v60 = vld [vmem:[#allocation2 + $0x8] sm:$0xff]
    %v61 = vld [vmem:[#allocation2 + $0x10] sm:$0xff]
    %v62 = vld [vmem:[#allocation2 + $0x18] sm:$0xff]
    %v63 = vld [vmem:[#allocation4] sm:$0x1]
    %v64 = vld [vmem:[#allocation6 + $0x410] sm:$0xff]
    %v65 = vld [vmem:[#allocation6 + $0x420] sm:$0xff]
    %v66 = vld [vmem:[#allocation6 + $0x430] sm:$0xff]
    %v67 = vld [vmem:[#allocation6 + $0x440] sm:$0xff]
    %v68 = vld [vmem:[#allocation6 + $0x450] sm:$0xff]
    %v69 = vld [vmem:[#allocation6 + $0x460] sm:$0xff]
    %v70 = vld [vmem:[#allocation6 + $0x470] sm:$0xff]
    %v71 = vld [vmem:[#allocation6 + $0x480] sm:$0xff]
    %v72 = vld [vmem:[#allocation6 + $0x4b0] sm:$0xff]
    %v73 = vld [vmem:[#allocation6 + $0x4c0] sm:$0xff]
    %v74 = vld [vmem:[#allocation6 + $0x4d0] sm:$0xff]
    %v75 = vld [vmem:[#allocation6 + $0x4e0] sm:$0xff]
    %v76 = vld [vmem:[#allocation6 + $0x4f0] sm:$0xff]
    %v77 = vld [vmem:[#allocation6 + $0x500] sm:$0xff]
    %v78 = vld [vmem:[#allocation6 + $0x510] sm:$0xff]
    %v79 = vld [vmem:[#allocation6 + $0x520] sm:$0xff]
    %v80 = vld [vmem:[#allocation6 + $0x530] sm:$0xff]
    %v81 = vld [vmem:[#allocation6 + $0x540] sm:$0xff]
    %v82 = vld [vmem:[#allocation6 + $0x550] sm:$0xff]
    %v83 = vld [vmem:[#allocation6 + $0x560] sm:$0xff]
    %v84 = vld [vmem:[#allocation6 + $0x570] sm:$0xff]
    %v85 = vld [vmem:[#allocation6 + $0x580] sm:$0xff]
    %v86 = vld [vmem:[#allocation6 + $0x590] sm:$0xff]
    %v87 = vld [vmem:[#allocation6 + $0x5a0] sm:$0xff]
    %v88 = vld [vmem:[#allocation6 + $0x5b0] sm:$0xff]
    %v89 = vld [vmem:[#allocation6 + $0x5c0] sm:$0xff]
    %v90 = vld [vmem:[#allocation6 + $0x5d0] sm:$0xff]
    %v91 = vld [vmem:[#allocation6 + $0x490] sm:$0xff]
    %v92 = vld [vmem:[#allocation6 + $0x4a0] sm:$0xff]
    %v93 = vld [vmem:[#allocation6 + $0x5e0] sm:$0xff]
    %vm94 = vcmask 130048
    %v96 = vsel %vm94, %v63, 0
    %98 = vmatpush.msra.mxu0 0.0
    %99 = vmatpush.msra.mxu0 0.0
    %100 = vmatpush.msra.mxu0 0.0
    %101 = vmatpush.msra.mxu0 0.0
    %102 = vmatpush.msra.mxu0 0.0
    %103 = vmatpush.msra.mxu0 0.0
    %104 = vmatpush.msra.mxu0 0.0
    %105 = vmatpush.msra.mxu0 0.0
    %106 = vmatpush.msra.mxu0 0.0
    %107 = vmatpush.msra.mxu0 0.0
    %108 = vmatpush.msra.mxu0 0.0
    %109 = vmatpush.msra.mxu0 0.0
    %110 = vmatpush.msra.mxu0 0.0
    %111 = vmatpush.msra.mxu0 0.0
    %112 = vmatpush.msra.mxu0 %v92
    %113 = vmatpush.msra.mxu0 %v91
    %114 = vmatmul.f32.gmra.mxu0 %v96
    %v115 = vpop.f32.mrf.mxu0
    %v116 = vadd.f32 0.0, %v115
    %117 = vdwg.mxu0
    %v118 = vperm.slane %v116, 0
    %v119 = vmul.f32 %v89, %v118
    %v120 = vmul.f32 %v90, %v118
    %v121 = vsub.f32 %v119, 1.0
    %v122 = vsub.f32 %v120, 1.0
    %v123 = vmul.f32 %v121, 1e+09
    %v124 = vmul.f32 %v122, 1e+09
    %v125 = vperm.slane %v63, 0
    %v127 = vmul.f32 %v93, %v125
    %v128 = vld [vmem:[#allocation6] sm:$0xff]
    %v129 = vld [vmem:[#allocation6 + $0x10] sm:$0xff]
    %v130 = vld [vmem:[#allocation6 + $0x20] sm:$0xff]
    %v131 = vld [vmem:[#allocation6 + $0x30] sm:$0xff]
    %v132 = vld [vmem:[#allocation6 + $0x40] sm:$0xff]
    %v133 = vld [vmem:[#allocation6 + $0x50] sm:$0xff]
    %v134 = vld [vmem:[#allocation6 + $0x60] sm:$0xff]
    %v135 = vld [vmem:[#allocation6 + $0x70] sm:$0xff]
    %v136 = vld [vmem:[#allocation6 + $0x80] sm:$0xff]
    %v137 = vld [vmem:[#allocation6 + $0x90] sm:$0xff]
    %v138 = vld [vmem:[#allocation6 + $0xa0] sm:$0xff]
    %v139 = vld [vmem:[#allocation6 + $0xb0] sm:$0xff]
    %v140 = vld [vmem:[#allocation6 + $0xc0] sm:$0xff]
    %v141 = vld [vmem:[#allocation6 + $0xd0] sm:$0xff]
    %v142 = vld [vmem:[#allocation6 + $0xe0] sm:$0xff]
    %v143 = vld [vmem:[#allocation6 + $0xf0] sm:$0xff]
    %v144 = vld [vmem:[#allocation6 + $0x100] sm:$0xff]
    %v145 = vld [vmem:[#allocation6 + $0x110] sm:$0xff]
    %v146 = vld [vmem:[#allocation6 + $0x120] sm:$0xff]
    %v147 = vld [vmem:[#allocation6 + $0x130] sm:$0xff]
    %v148 = vld [vmem:[#allocation6 + $0x140] sm:$0xff]
    %v149 = vld [vmem:[#allocation6 + $0x150] sm:$0xff]
    %v150 = vld [vmem:[#allocation6 + $0x160] sm:$0xff]
    %v151 = vld [vmem:[#allocation6 + $0x170] sm:$0xff]
    %v152 = vld [vmem:[#allocation6 + $0x180] sm:$0xff]
    %v153 = vld [vmem:[#allocation6 + $0x190] sm:$0xff]
    %v154 = vld [vmem:[#allocation6 + $0x1a0] sm:$0xff]
    %v155 = vld [vmem:[#allocation6 + $0x1b0] sm:$0xff]
    %v156 = vld [vmem:[#allocation6 + $0x1c0] sm:$0xff]
    %v157 = vld [vmem:[#allocation6 + $0x1d0] sm:$0xff]
    %v158 = vld [vmem:[#allocation6 + $0x1e0] sm:$0xff]
    %v159 = vld [vmem:[#allocation6 + $0x1f0] sm:$0xff]
    %v160 = vld [vmem:[#allocation6 + $0x5f0] ss:$0 sm:$0xff]
    %161 = vmatpush.msra.mxu0 %v143
    %162 = vmatpush.msra.mxu0 %v142
    %163 = vmatpush.msra.mxu0 %v141
    %164 = vmatpush.msra.mxu0 %v140
    %165 = vmatpush.msra.mxu0 %v139
    %166 = vmatpush.msra.mxu0 %v138
    %167 = vmatpush.msra.mxu0 %v137
    %168 = vmatpush.msra.mxu0 %v136
    %169 = vmatpush.msra.mxu0 %v135
    %170 = vmatpush.msra.mxu0 %v134
    %171 = vmatpush.msra.mxu0 %v133
    %172 = vmatpush.msra.mxu0 %v132
    %173 = vmatpush.msra.mxu0 %v131
    %174 = vmatpush.msra.mxu0 %v130
    %175 = vmatpush.msra.mxu0 %v129
    %176 = vmatpush.msra.mxu0 %v128
    %177 = vmatmul.f32.gmra.mxu0 %v59
    %v178 = vpop.f32.mrf.mxu0
    %v179 = vadd.f32 %v160, %v178
    %180 = vmatmul.f32.gmra.mxu0 %v61
    %v181 = vpop.f32.mrf.mxu0
    %v182 = vadd.f32 %v160, %v181
    %183 = vdwg.mxu0
    %184 = vmatpush.msra.mxu0 %v159
    %185 = vmatpush.msra.mxu0 %v158
    %186 = vmatpush.msra.mxu0 %v157
    %187 = vmatpush.msra.mxu0 %v156
    %188 = vmatpush.msra.mxu0 %v155
    %189 = vmatpush.msra.mxu0 %v154
    %190 = vmatpush.msra.mxu0 %v153
    %191 = vmatpush.msra.mxu0 %v152
    %192 = vmatpush.msra.mxu0 %v151
    %193 = vmatpush.msra.mxu0 %v150
    %194 = vmatpush.msra.mxu0 %v149
    %195 = vmatpush.msra.mxu0 %v148
    %196 = vmatpush.msra.mxu0 %v147
    %197 = vmatpush.msra.mxu0 %v146
    %198 = vmatpush.msra.mxu0 %v145
    %199 = vmatpush.msra.mxu0 %v144
    %200 = vmatmul.f32.gmra.mxu0 %v60
    %v201 = vpop.f32.mrf.mxu0
    %v202 = vadd.f32 %v179, %v201
    %203 = vmatmul.f32.gmra.mxu0 %v62
    %v204 = vpop.f32.mrf.mxu0
    %v205 = vadd.f32 %v182, %v204
    %206 = vdwg.mxu0
    %vm207 = vcmask 64512
    %v208 = vsel %vm207, %v202, -inf
    %209 = vmax.xlane.f32.xlu0 %v208
    %v210 = vpop.xlane.xlu0 %209
    %v211 = vsel %vm207, %v205, -inf
    %212 = vmax.xlane.f32.xlu0 %v211
    %v213 = vpop.xlane.xlu0 %212
    %v214 = vsub.f32 %v202, %v210
    %v215 = vsub.f32 %v205, %v213
    %v216 = vmul.f32 %v214, 1.442695
    %v217 = vpow.pop %v216
    %v218 = vmul.f32 %v215, 1.442695
    %v219 = vpow.pop %v218
    %v220 = vsel %vm207, %v217, 0.0
    %221 = vadd.xlane.f32.xlu0 %v220
    %v222 = vpop.xlane.xlu0 %221
    %v223 = vsel %vm207, %v219, 0.0
    %224 = vadd.xlane.f32.xlu0 %v223
    %v225 = vpop.xlane.xlu0 %224
    %v226 = vrcp.pop %v222
    %v227 = vmul.f32 %v222, %v226
    %v228 = vsub.f32 1.0, %v227
    %v229 = vmul.f32 %v226, %v228
    %v230 = vadd.f32 %v226, %v229
    %vm231 = vweird.f32 %v222
    %vm232 = vweird.f32 %v226
    %vm233 = vmor %vm231, %vm232
    %v234 = vsel %vm233, %v226, %v230
    %v235 = vand.u32 2147483647, %v222
    %vm236 = vcmp.eq.f32.partialorder %v235, 8.507059e+37
    %v237 = vand.u32 %v222, 2147483648
    %v238 = vor.u32 1.1754944e-38, %v237
    %v239 = vsel %vm236, %v238, %v234
    %v240 = vmul.f32 %v217, %v239
    %v241 = vrcp.pop %v225
    %v242 = vmul.f32 %v225, %v241
    %v243 = vsub.f32 1.0, %v242
    %v244 = vmul.f32 %v241, %v243
    %v245 = vadd.f32 %v241, %v244
    %vm246 = vweird.f32 %v225
    %vm247 = vweird.f32 %v241
    %vm248 = vmor %vm246, %vm247
    %v249 = vsel %vm248, %v241, %v245
    %v250 = vand.u32 2147483647, %v225
    %vm251 = vcmp.eq.f32.partialorder %v250, 8.507059e+37
    %v252 = vand.u32 %v225, 2147483648
    %v253 = vor.u32 1.1754944e-38, %v252
    %v254 = vsel %vm251, %v253, %v249
    %v255 = vmul.f32 %v219, %v254
    %v256 = vld [vmem:[#allocation6 + $0x200] sm:$0xff]
    %v257 = vld [vmem:[#allocation6 + $0x208] sm:$0xff]
    %v259 = vsel %vm207, %v240, 0
    %v262 = vsel %vm207, %v255, 0
    %264 = vmatpush.msra.mxu0 0.0
    %265 = vmatpush.msra.mxu0 0.0
    %266 = vmatpush.msra.mxu0 0.0
    %267 = vmatpush.msra.mxu0 0.0
    %268 = vmatpush.msra.mxu0 0.0
    %269 = vmatpush.msra.mxu0 0.0
    %270 = vmatpush.msra.mxu0 0.0
    %271 = vmatpush.msra.mxu0 0.0
    %272 = vmatpush.msra.mxu0 0.0
    %273 = vmatpush.msra.mxu0 0.0
    %274 = vmatpush.msra.mxu0 0.0
    %275 = vmatpush.msra.mxu0 0.0
    %276 = vmatpush.msra.mxu0 0.0
    %277 = vmatpush.msra.mxu0 0.0
    %278 = vmatpush.msra.mxu0 0.0
    %279 = vmatpush.msra.mxu0 %v256
    %280 = vmatmul.f32.gmra.mxu0 %v259
    %v281 = vpop.f32.mrf.mxu0
    %v282 = vadd.f32 0.0, %v281
    %283 = vmatmul.f32.gmra.mxu0 %v262
    %v284 = vpop.f32.mrf.mxu0
    %v285 = vadd.f32 0.0, %v284
    %286 = vdwg.mxu0
    %287 = vmatpush.msra.mxu0 0.0
    %288 = vmatpush.msra.mxu0 0.0
    %289 = vmatpush.msra.mxu0 0.0
    %290 = vmatpush.msra.mxu0 0.0
    %291 = vmatpush.msra.mxu0 0.0
    %292 = vmatpush.msra.mxu0 0.0
    %293 = vmatpush.msra.mxu0 0.0
    %294 = vmatpush.msra.mxu0 0.0
    %295 = vmatpush.msra.mxu0 0.0
    %296 = vmatpush.msra.mxu0 0.0
    %297 = vmatpush.msra.mxu0 0.0
    %298 = vmatpush.msra.mxu0 0.0
    %299 = vmatpush.msra.mxu0 0.0
    %300 = vmatpush.msra.mxu0 0.0
    %301 = vmatpush.msra.mxu0 0.0
    %302 = vmatpush.msra.mxu0 %v257
    %303 = vmatmul.f32.gmra.mxu0 %v259
    %v304 = vpop.f32.mrf.mxu0
    %v305 = vadd.f32 0.0, %v304
    %306 = vmatmul.f32.gmra.mxu0 %v262
    %v307 = vpop.f32.mrf.mxu0
    %v308 = vadd.f32 0.0, %v307
    %309 = vdwg.mxu0
    %v310 = vmul.f32 %v282, %v59
    %v311 = vmul.f32 %v305, %v60
    %v312 = vmul.f32 %v285, %v61
    %v313 = vmul.f32 %v308, %v62
    %v314 = vld [vmem:[#allocation6 + $0x210] sm:$0xff]
    %v315 = vld [vmem:[#allocation6 + $0x220] sm:$0xff]
    %v316 = vld [vmem:[#allocation6 + $0x230] sm:$0xff]
    %v317 = vld [vmem:[#allocation6 + $0x240] sm:$0xff]
    %v318 = vld [vmem:[#allocation6 + $0x250] sm:$0xff]
    %v319 = vld [vmem:[#allocation6 + $0x260] sm:$0xff]
    %v320 = vld [vmem:[#allocation6 + $0x270] sm:$0xff]
    %v321 = vld [vmem:[#allocation6 + $0x280] sm:$0xff]
    %v322 = vld [vmem:[#allocation6 + $0x290] sm:$0xff]
    %v323 = vld [vmem:[#allocation6 + $0x2a0] sm:$0xff]
    %v324 = vld [vmem:[#allocation6 + $0x2b0] sm:$0xff]
    %v325 = vld [vmem:[#allocation6 + $0x2c0] sm:$0xff]
    %v326 = vld [vmem:[#allocation6 + $0x2d0] sm:$0xff]
    %v327 = vld [vmem:[#allocation6 + $0x2e0] sm:$0xff]
    %v328 = vld [vmem:[#allocation6 + $0x2f0] sm:$0xff]
    %v329 = vld [vmem:[#allocation6 + $0x300] sm:$0xff]
    %v330 = vld [vmem:[#allocation6 + $0x310] sm:$0xff]
    %v331 = vld [vmem:[#allocation6 + $0x320] sm:$0xff]
    %v332 = vld [vmem:[#allocation6 + $0x330] sm:$0xff]
    %v333 = vld [vmem:[#allocation6 + $0x340] sm:$0xff]
    %v334 = vld [vmem:[#allocation6 + $0x350] sm:$0xff]
    %v335 = vld [vmem:[#allocation6 + $0x360] sm:$0xff]
    %v336 = vld [vmem:[#allocation6 + $0x370] sm:$0xff]
    %v337 = vld [vmem:[#allocation6 + $0x380] sm:$0xff]
    %v338 = vld [vmem:[#allocation6 + $0x390] sm:$0xff]
    %v339 = vld [vmem:[#allocation6 + $0x3a0] sm:$0xff]
    %v340 = vld [vmem:[#allocation6 + $0x3b0] sm:$0xff]
    %v341 = vld [vmem:[#allocation6 + $0x3c0] sm:$0xff]
    %v342 = vld [vmem:[#allocation6 + $0x3d0] sm:$0xff]
    %v343 = vld [vmem:[#allocation6 + $0x3e0] sm:$0xff]
    %v344 = vld [vmem:[#allocation6 + $0x3f0] sm:$0xff]
    %v345 = vld [vmem:[#allocation6 + $0x400] sm:$0xff]
    %346 = vmatpush.msra.mxu0 %v329
    %347 = vmatpush.msra.mxu0 %v328
    %348 = vmatpush.msra.mxu0 %v327
    %349 = vmatpush.msra.mxu0 %v326
    %350 = vmatpush.msra.mxu0 %v325
    %351 = vmatpush.msra.mxu0 %v324
    %352 = vmatpush.msra.mxu0 %v323
    %353 = vmatpush.msra.mxu0 %v322
    %354 = vmatpush.msra.mxu0 %v321
    %355 = vmatpush.msra.mxu0 %v320
    %356 = vmatpush.msra.mxu0 %v319
    %357 = vmatpush.msra.mxu0 %v318
    %358 = vmatpush.msra.mxu0 %v317
    %359 = vmatpush.msra.mxu0 %v316
    %360 = vmatpush.msra.mxu0 %v315
    %361 = vmatpush.msra.mxu0 %v314
    %362 = vmatmul.f32.gmra.mxu0 %v310
    %v363 = vpop.f32.mrf.mxu0
    %v364 = vadd.f32 0.0, %v363
    %365 = vmatmul.f32.gmra.mxu0 %v312
    %v366 = vpop.f32.mrf.mxu0
    %v367 = vadd.f32 0.0, %v366
    %368 = vdwg.mxu0
    %369 = vmatpush.msra.mxu0 %v345
    %370 = vmatpush.msra.mxu0 %v344
    %371 = vmatpush.msra.mxu0 %v343
    %372 = vmatpush.msra.mxu0 %v342
    %373 = vmatpush.msra.mxu0 %v341
    %374 = vmatpush.msra.mxu0 %v340
    %375 = vmatpush.msra.mxu0 %v339
    %376 = vmatpush.msra.mxu0 %v338
    %377 = vmatpush.msra.mxu0 %v337
    %378 = vmatpush.msra.mxu0 %v336
    %379 = vmatpush.msra.mxu0 %v335
    %380 = vmatpush.msra.mxu0 %v334
    %381 = vmatpush.msra.mxu0 %v333
    %382 = vmatpush.msra.mxu0 %v332
    %383 = vmatpush.msra.mxu0 %v331
    %384 = vmatpush.msra.mxu0 %v330
    %385 = vmatmul.f32.gmra.mxu0 %v311
    %v386 = vpop.f32.mrf.mxu0
    %v387 = vadd.f32 %v364, %v386
    %388 = vmatmul.f32.gmra.mxu0 %v313
    %v389 = vpop.f32.mrf.mxu0
    %v390 = vadd.f32 %v367, %v389
    %391 = vdwg.mxu0
    %v392 = vld [vmem:[#allocation6 + $0x640] sm:$0xff]
    %v393 = vld [vmem:[#allocation6 + $0x650] sm:$0xff]
    %v394 = vld [vmem:[#allocation6 + $0x660] sm:$0xff]
    %v395 = vld [vmem:[#allocation6 + $0x670] sm:$0xff]
    %v396 = vld [vmem:[#allocation6 + $0x780] ss:$0 sm:$0xff]
    %vm397 = vcmask 261120
    %v399 = vsel %vm397, %v387, 0
    %v402 = vsel %vm397, %v390, 0
    %404 = vmatpush.msra.mxu0 0.0
    %405 = vmatpush.msra.mxu0 0.0
    %406 = vmatpush.msra.mxu0 0.0
    %407 = vmatpush.msra.mxu0 0.0
    %408 = vmatpush.msra.mxu0 0.0
    %409 = vmatpush.msra.mxu0 0.0
    %410 = vmatpush.msra.mxu0 0.0
    %411 = vmatpush.msra.mxu0 0.0
    %412 = vmatpush.msra.mxu0 0.0
    %413 = vmatpush.msra.mxu0 0.0
    %414 = vmatpush.msra.mxu0 0.0
    %415 = vmatpush.msra.mxu0 0.0
    %416 = vmatpush.msra.mxu0 %v395
    %417 = vmatpush.msra.mxu0 %v394
    %418 = vmatpush.msra.mxu0 %v393
    %419 = vmatpush.msra.mxu0 %v392
    %420 = vmatmul.f32.gmra.mxu0 %v399
    %v421 = vpop.f32.mrf.mxu0
    %v422 = vadd.f32 %v396, %v421
    %423 = vmatmul.f32.gmra.mxu0 %v402
    %v424 = vpop.f32.mrf.mxu0
    %v425 = vadd.f32 %v396, %v424
    %426 = vdwg.mxu0
    %429 = vrot.lane.b32.xlu0 %v422, 96
    %v430 = vpop.permute.xlu0 %429
    %431 = vrot.lane.b32.xlu0 %v425, 96
    %v432 = vpop.permute.xlu0 %431
    %v436 = vsel %vm94, %v64, 0
    %v439 = vsel %vm94, %v65, 0
    %v442 = vsel %vm94, %v66, 0
    %v445 = vsel %vm94, %v67, 0
    %v448 = vsel %vm94, %v68, 0
    %v451 = vsel %vm94, %v69, 0
    %v454 = vsel %vm94, %v70, 0
    %v457 = vsel %vm94, %v71, 0
    %459 = vmatpush.msra.mxu0 0.0
    %460 = vmatpush.msra.mxu0 0.0
    %461 = vmatpush.msra.mxu0 0.0
    %462 = vmatpush.msra.mxu0 0.0
    %463 = vmatpush.msra.mxu0 0.0
    %464 = vmatpush.msra.mxu0 0.0
    %465 = vmatpush.msra.mxu0 0.0
    %466 = vmatpush.msra.mxu0 0.0
    %467 = vmatpush.msra.mxu0 0.0
    %468 = vmatpush.msra.mxu0 0.0
    %469 = vmatpush.msra.mxu0 0.0
    %470 = vmatpush.msra.mxu0 0.0
    %471 = vmatpush.msra.mxu0 0.0
    %472 = vmatpush.msra.mxu0 0.0
    %473 = vmatpush.msra.mxu0 %v432
    %474 = vmatpush.msra.mxu0 %v430
    %475 = vmatmul.f32.gmra.mxu0 %v436
    %v476 = vpop.f32.mrf.mxu0
    %v477 = vadd.f32 0.0, %v476
    %478 = vmatmul.f32.gmra.mxu0 %v439
    %v479 = vpop.f32.mrf.mxu0
    %v480 = vadd.f32 0.0, %v479
    %481 = vmatmul.f32.gmra.mxu0 %v442
    %v482 = vpop.f32.mrf.mxu0
    %v483 = vadd.f32 0.0, %v482
    %484 = vmatmul.f32.gmra.mxu0 %v445
    %v485 = vpop.f32.mrf.mxu0
    %v486 = vadd.f32 0.0, %v485
    %487 = vmatmul.f32.gmra.mxu0 %v448
    %v488 = vpop.f32.mrf.mxu0
    %v489 = vadd.f32 0.0, %v488
    %490 = vmatmul.f32.gmra.mxu0 %v451
    %v491 = vpop.f32.mrf.mxu0
    %v492 = vadd.f32 0.0, %v491
    %493 = vmatmul.f32.gmra.mxu0 %v454
    %v494 = vpop.f32.mrf.mxu0
    %v495 = vadd.f32 0.0, %v494
    %496 = vmatmul.f32.gmra.mxu0 %v457
    %v497 = vpop.f32.mrf.mxu0
    %v498 = vadd.f32 0.0, %v497
    %499 = vdwg.mxu0
    %v500 = vmul.f32 %v477, %v72
    %v501 = vmul.f32 %v480, %v73
    %v502 = vmul.f32 %v483, %v74
    %v503 = vmul.f32 %v486, %v75
    %v504 = vmul.f32 %v489, %v76
    %v505 = vmul.f32 %v492, %v77
    %v506 = vmul.f32 %v495, %v78
    %v507 = vmul.f32 %v498, %v79
    %516 = vrot.lane.b32.xlu0 %v72, 32
    %v517 = vpop.permute.xlu0 %516
    %518 = vrot.lane.b32.xlu0 %v73, 32
    %v519 = vpop.permute.xlu0 %518
    %520 = vrot.lane.b32.xlu0 %v74, 32
    %v521 = vpop.permute.xlu0 %520
    %522 = vrot.lane.b32.xlu0 %v75, 32
    %v523 = vpop.permute.xlu0 %522
    %524 = vrot.lane.b32.xlu0 %v76, 32
    %v525 = vpop.permute.xlu0 %524
    %526 = vrot.lane.b32.xlu0 %v77, 32
    %v527 = vpop.permute.xlu0 %526
    %528 = vrot.lane.b32.xlu0 %v78, 32
    %v529 = vpop.permute.xlu0 %528
    %530 = vrot.lane.b32.xlu0 %v79, 32
    %v531 = vpop.permute.xlu0 %530
    %v540 = vmul.f32 %v477, %v517
    %v541 = vmul.f32 %v480, %v519
    %v542 = vmul.f32 %v483, %v521
    %v543 = vmul.f32 %v486, %v523
    %v544 = vmul.f32 %v489, %v525
    %v545 = vmul.f32 %v492, %v527
    %v546 = vmul.f32 %v495, %v529
    %v547 = vmul.f32 %v498, %v531
    %v548 = vsel %vm397, %v422, 0
    %v550 = vsel %vm397, %v425, 0
    %v553 = vsel %vm397, %v500, 0
    %v556 = vsel %vm397, %v501, 0
    %v559 = vsel %vm397, %v502, 0
    %v562 = vsel %vm397, %v503, 0
    %v565 = vsel %vm397, %v504, 0
    %v568 = vsel %vm397, %v505, 0
    %v571 = vsel %vm397, %v506, 0
    %v574 = vsel %vm397, %v507, 0
    %576 = vmatpush.xpose.msra.mxu0 0.0
    %577 = vmatpush.xpose.msra.mxu0 0.0
    %578 = vmatpush.xpose.msra.mxu0 0.0
    %579 = vmatpush.xpose.msra.mxu0 0.0
    %580 = vmatpush.xpose.msra.mxu0 0.0
    %581 = vmatpush.xpose.msra.mxu0 0.0
    %582 = vmatpush.xpose.msra.mxu0 0.0
    %583 = vmatpush.xpose.msra.mxu0 0.0
    %584 = vmatpush.xpose.msra.mxu0 %v574
    %585 = vmatpush.xpose.msra.mxu0 %v571
    %586 = vmatpush.xpose.msra.mxu0 %v568
    %587 = vmatpush.xpose.msra.mxu0 %v565
    %588 = vmatpush.xpose.msra.mxu0 %v562
    %589 = vmatpush.xpose.msra.mxu0 %v559
    %590 = vmatpush.xpose.msra.mxu0 %v556
    %591 = vmatpush.xpose.msra.mxu0 %v553
    %592 = vmatmul.f32.gmra.mxu0 %v548
    %v593 = vpop.f32.mrf.mxu0
    %v594 = vadd.f32 %v123, %v593
    %595 = vmatmul.f32.gmra.mxu0 %v550
    %v596 = vpop.f32.mrf.mxu0
    %v597 = vadd.f32 %v124, %v596
    %598 = vdwg.mxu0
    %vm599 = vcmask 523264
    %v600 = vsel %vm599, %v594, -inf
    %601 = vmax.xlane.f32.xlu0 %v600
    %v602 = vpop.xlane.xlu0 %601
    %v603 = vsel %vm599, %v597, -inf
    %604 = vmax.xlane.f32.xlu0 %v603
    %v605 = vpop.xlane.xlu0 %604
    %v606 = vsub.f32 %v594, %v602
    %v607 = vsub.f32 %v597, %v605
    %v608 = vmul.f32 %v606, 1.442695
    %v609 = vpow.pop %v608
    %v610 = vmul.f32 %v607, 1.442695
    %v611 = vpow.pop %v610
    %v613 = vsel %vm599, %v609, 0
    %v616 = vsel %vm599, %v611, 0
    %618 = vmatpush.msra.mxu0 0.0
    %619 = vmatpush.msra.mxu0 0.0
    %620 = vmatpush.msra.mxu0 0.0
    %621 = vmatpush.msra.mxu0 0.0
    %622 = vmatpush.msra.mxu0 0.0
    %623 = vmatpush.msra.mxu0 0.0
    %624 = vmatpush.msra.mxu0 0.0
    %625 = vmatpush.msra.mxu0 0.0
    %626 = vmatpush.msra.mxu0 %v87
    %627 = vmatpush.msra.mxu0 %v86
    %628 = vmatpush.msra.mxu0 %v85
    %629 = vmatpush.msra.mxu0 %v84
    %630 = vmatpush.msra.mxu0 %v83
    %631 = vmatpush.msra.mxu0 %v82
    %632 = vmatpush.msra.mxu0 %v81
    %633 = vmatpush.msra.mxu0 %v80
    %634 = vmatmul.f32.gmra.mxu0 %v613
    %v635 = vpop.f32.mrf.mxu0
    %v636 = vadd.f32 0.0, %v635
    %637 = vmatmul.f32.gmra.mxu0 %v616
    %v638 = vpop.f32.mrf.mxu0
    %v639 = vadd.f32 0.0, %v638
    %640 = vdwg.mxu0
    %v641 = vmax.f32 %v636, 1e-30
    %v642 = vmax.f32 %v639, 1e-30
    %v643 = vrcp.pop %v641
    %v644 = vrcp.pop %v642
    %v646 = vsel %vm207, %v643, 0
    %v649 = vsel %vm207, %v644, 0
    %651 = vmatpush.msra.mxu0 0.0
    %652 = vmatpush.msra.mxu0 0.0
    %653 = vmatpush.msra.mxu0 0.0
    %654 = vmatpush.msra.mxu0 0.0
    %655 = vmatpush.msra.mxu0 0.0
    %656 = vmatpush.msra.mxu0 0.0
    %657 = vmatpush.msra.mxu0 0.0
    %658 = vmatpush.msra.mxu0 0.0
    %659 = vmatpush.msra.mxu0 0.0
    %660 = vmatpush.msra.mxu0 0.0
    %661 = vmatpush.msra.mxu0 0.0
    %662 = vmatpush.msra.mxu0 0.0
    %663 = vmatpush.msra.mxu0 0.0
    %664 = vmatpush.msra.mxu0 0.0
    %665 = vmatpush.msra.mxu0 0.0
    %666 = vmatpush.msra.mxu0 %v88
    %667 = vmatmul.f32.gmra.mxu0 %v646
    %v668 = vpop.f32.mrf.mxu0
    %v669 = vadd.f32 0.0, %v668
    %670 = vmatmul.f32.gmra.mxu0 %v649
    %v671 = vpop.f32.mrf.mxu0
    %v672 = vadd.f32 0.0, %v671
    %673 = vdwg.mxu0
    %v674 = vmul.f32 %v609, %v669
    %v675 = vmul.f32 %v611, %v672
    %684 = vrot.lane.b32.xlu0 %v540, 96
    %v685 = vpop.permute.xlu0 %684
    %686 = vrot.lane.b32.xlu0 %v541, 96
    %v687 = vpop.permute.xlu0 %686
    %688 = vrot.lane.b32.xlu0 %v542, 96
    %v689 = vpop.permute.xlu0 %688
    %690 = vrot.lane.b32.xlu0 %v543, 96
    %v691 = vpop.permute.xlu0 %690
    %692 = vrot.lane.b32.xlu0 %v544, 96
    %v693 = vpop.permute.xlu0 %692
    %694 = vrot.lane.b32.xlu0 %v545, 96
    %v695 = vpop.permute.xlu0 %694
    %696 = vrot.lane.b32.xlu0 %v546, 96
    %v697 = vpop.permute.xlu0 %696
    %698 = vrot.lane.b32.xlu0 %v547, 96
    %v699 = vpop.permute.xlu0 %698
    %v709 = vsel %vm599, %v674, 0
    %v712 = vsel %vm599, %v675, 0
    %714 = vmatpush.msra.mxu0 0.0
    %715 = vmatpush.msra.mxu0 0.0
    %716 = vmatpush.msra.mxu0 0.0
    %717 = vmatpush.msra.mxu0 0.0
    %718 = vmatpush.msra.mxu0 0.0
    %719 = vmatpush.msra.mxu0 0.0
    %720 = vmatpush.msra.mxu0 0.0
    %721 = vmatpush.msra.mxu0 0.0
    %722 = vmatpush.msra.mxu0 %v699
    %723 = vmatpush.msra.mxu0 %v697
    %724 = vmatpush.msra.mxu0 %v695
    %725 = vmatpush.msra.mxu0 %v693
    %726 = vmatpush.msra.mxu0 %v691
    %727 = vmatpush.msra.mxu0 %v689
    %728 = vmatpush.msra.mxu0 %v687
    %729 = vmatpush.msra.mxu0 %v685
    %730 = vmatmul.f32.gmra.mxu0 %v709
    %v731 = vpop.f32.mrf.mxu0
    %v732 = vadd.f32 0.0, %v731
    %733 = vmatmul.f32.gmra.mxu0 %v712
    %v734 = vpop.f32.mrf.mxu0
    %v735 = vadd.f32 0.0, %v734
    %736 = vdwg.mxu0
    %v737 = vld [vmem:[#allocation6 + $0x680] sm:$0xff]
    %v738 = vld [vmem:[#allocation6 + $0x690] sm:$0xff]
    %v739 = vld [vmem:[#allocation6 + $0x6a0] sm:$0xff]
    %v740 = vld [vmem:[#allocation6 + $0x6b0] sm:$0xff]
    %v741 = vld [vmem:[#allocation6 + $0x781] ss:$0 sm:$0xff]
    %v743 = vsel %vm397, %v732, 0
    %v746 = vsel %vm397, %v735, 0
    %748 = vmatpush.msra.mxu0 0.0
    %749 = vmatpush.msra.mxu0 0.0
    %750 = vmatpush.msra.mxu0 0.0
    %751 = vmatpush.msra.mxu0 0.0
    %752 = vmatpush.msra.mxu0 0.0
    %753 = vmatpush.msra.mxu0 0.0
    %754 = vmatpush.msra.mxu0 0.0
    %755 = vmatpush.msra.mxu0 0.0
    %756 = vmatpush.msra.mxu0 0.0
    %757 = vmatpush.msra.mxu0 0.0
    %758 = vmatpush.msra.mxu0 0.0
    %759 = vmatpush.msra.mxu0 0.0
    %760 = vmatpush.msra.mxu0 %v740
    %761 = vmatpush.msra.mxu0 %v739
    %762 = vmatpush.msra.mxu0 %v738
    %763 = vmatpush.msra.mxu0 %v737
    %764 = vmatmul.f32.gmra.mxu0 %v743
    %v765 = vpop.f32.mrf.mxu0
    %v766 = vadd.f32 %v741, %v765
    %767 = vmatmul.f32.gmra.mxu0 %v746
    %v768 = vpop.f32.mrf.mxu0
    %v769 = vadd.f32 %v741, %v768
    %770 = vdwg.mxu0
    %v771 = vadd.f32 %v387, %v766
    %v772 = vadd.f32 %v390, %v769
    %v773 = vld [vmem:[#allocation6 + $0x784] ss:$0 sm:$0xff]
    %v774 = vld [vmem:[#allocation6 + $0x785] ss:$0 sm:$0xff]
    %v775 = vsel %vm397, %v771, 0.0
    %776 = vadd.xlane.f32.xlu0 %v775
    %v777 = vpop.xlane.xlu0 %776
    %v778 = vsel %vm397, %v772, 0.0
    %779 = vadd.xlane.f32.xlu0 %v778
    %v780 = vpop.xlane.xlu0 %779
    %v781 = vrcp.pop 32.0
    %v782 = vmul.f32 32.0, %v781
    %v783 = vsub.f32 1.0, %v782
    %v784 = vmul.f32 %v781, %v783
    %v785 = vadd.f32 %v781, %v784
    %vm786 = vweird.f32 %v781
    %v787 = vsel %vm786, %v781, %v785
    %v788 = vmul.f32 %v777, %v787
    %v789 = vmul.f32 %v780, %v787
    %v790 = vsub.f32 %v771, %v788
    %v791 = vsub.f32 %v772, %v789
    %v792 = vmul.f32 %v790, %v790
    %v793 = vmul.f32 %v791, %v791
    %v794 = vsel %vm397, %v792, 0.0
    %795 = vadd.xlane.f32.xlu0 %v794
    %v796 = vpop.xlane.xlu0 %795
    %v797 = vsel %vm397, %v793, 0.0
    %798 = vadd.xlane.f32.xlu0 %v797
    %v799 = vpop.xlane.xlu0 %798
    %v800 = vmul.f32 %v796, %v787
    %v801 = vmul.f32 %v799, %v787
    %v802 = vadd.f32 %v800, 1e-05
    %v803 = vadd.f32 %v801, 1e-05
    %v804 = vrsqrt.pop %v802
    %v805 = vmul.f32 %v804, %v802
    %v806 = vmul.f32 %v805, %v804
    %v807 = vmul.f32 0.5, %v806
    %v808 = vsub.f32 1.5, %v807
    %v809 = vmul.f32 %v804, %v808
    %vm810 = vweird.f32 %v802
    %vm811 = vweird.f32 %v804
    %vm812 = vmor %vm810, %vm811
    %v813 = vsel %vm812, %v804, %v809
    %v814 = vrsqrt.pop %v803
    %v815 = vmul.f32 %v814, %v803
    %v816 = vmul.f32 %v815, %v814
    %v817 = vmul.f32 0.5, %v816
    %v818 = vsub.f32 1.5, %v817
    %v819 = vmul.f32 %v814, %v818
    %vm820 = vweird.f32 %v803
    %vm821 = vweird.f32 %v814
    %vm822 = vmor %vm820, %vm821
    %v823 = vsel %vm822, %v814, %v819
    %v824 = vmul.f32 %v790, %v813
    %v825 = vmul.f32 %v791, %v823
    %v826 = vmul.f32 %v824, %v773
    %v827 = vmul.f32 %v825, %v773
    %v828 = vadd.f32 %v826, %v774
    %v829 = vadd.f32 %v827, %v774
    %v830 = vld [vmem:[#allocation6 + $0x6c0] sm:$0xff]
    %v831 = vld [vmem:[#allocation6 + $0x6d0] sm:$0xff]
    %v832 = vld [vmem:[#allocation6 + $0x6e0] sm:$0xff]
    %v833 = vld [vmem:[#allocation6 + $0x6f0] sm:$0xff]
    %v834 = vld [vmem:[#allocation6 + $0x782] ss:$0 sm:$0xff]
    %v836 = vsel %vm397, %v828, 0
    %v839 = vsel %vm397, %v829, 0
    %841 = vmatpush.msra.mxu0 0.0
    %842 = vmatpush.msra.mxu0 0.0
    %843 = vmatpush.msra.mxu0 0.0
    %844 = vmatpush.msra.mxu0 0.0
    %845 = vmatpush.msra.mxu0 0.0
    %846 = vmatpush.msra.mxu0 0.0
    %847 = vmatpush.msra.mxu0 0.0
    %848 = vmatpush.msra.mxu0 0.0
    %849 = vmatpush.msra.mxu0 0.0
    %850 = vmatpush.msra.mxu0 0.0
    %851 = vmatpush.msra.mxu0 0.0
    %852 = vmatpush.msra.mxu0 0.0
    %853 = vmatpush.msra.mxu0 %v833
    %854 = vmatpush.msra.mxu0 %v832
    %855 = vmatpush.msra.mxu0 %v831
    %856 = vmatpush.msra.mxu0 %v830
    %857 = vmatmul.f32.gmra.mxu0 %v836
    %v858 = vpop.f32.mrf.mxu0
    %v859 = vadd.f32 %v834, %v858
    %860 = vmatmul.f32.gmra.mxu0 %v839
    %v861 = vpop.f32.mrf.mxu0
    %v862 = vadd.f32 %v834, %v861
    %863 = vdwg.mxu0
    %v864 = vmax.f32 %v859, 0.0
    %v865 = vmax.f32 %v862, 0.0
    %v866 = vld [vmem:[#allocation6 + $0x700] sm:$0xff]
    %v867 = vld [vmem:[#allocation6 + $0x710] sm:$0xff]
    %v868 = vld [vmem:[#allocation6 + $0x720] sm:$0xff]
    %v869 = vld [vmem:[#allocation6 + $0x730] sm:$0xff]
    %v870 = vld [vmem:[#allocation6 + $0x740] sm:$0xff]
    %v871 = vld [vmem:[#allocation6 + $0x750] sm:$0xff]
    %v872 = vld [vmem:[#allocation6 + $0x760] sm:$0xff]
    %v873 = vld [vmem:[#allocation6 + $0x770] sm:$0xff]
    %v874 = vld [vmem:[#allocation6 + $0x783] ss:$0 sm:$0xff]
    %v876 = vsel %vm599, %v864, 0
    %v879 = vsel %vm599, %v865, 0
    %881 = vmatpush.msra.mxu0 0.0
    %882 = vmatpush.msra.mxu0 0.0
    %883 = vmatpush.msra.mxu0 0.0
    %884 = vmatpush.msra.mxu0 0.0
    %885 = vmatpush.msra.mxu0 0.0
    %886 = vmatpush.msra.mxu0 0.0
    %887 = vmatpush.msra.mxu0 0.0
    %888 = vmatpush.msra.mxu0 0.0
    %889 = vmatpush.msra.mxu0 %v873
    %890 = vmatpush.msra.mxu0 %v872
    %891 = vmatpush.msra.mxu0 %v871
    %892 = vmatpush.msra.mxu0 %v870
    %893 = vmatpush.msra.mxu0 %v869
    %894 = vmatpush.msra.mxu0 %v868
    %895 = vmatpush.msra.mxu0 %v867
    %896 = vmatpush.msra.mxu0 %v866
    %897 = vmatmul.f32.gmra.mxu0 %v876
    %v898 = vpop.f32.mrf.mxu0
    %v899 = vadd.f32 %v874, %v898
    %900 = vmatmul.f32.gmra.mxu0 %v879
    %v901 = vpop.f32.mrf.mxu0
    %v902 = vadd.f32 %v874, %v901
    %903 = vdwg.mxu0
    %v904 = vadd.f32 %v828, %v899
    %v905 = vadd.f32 %v829, %v902
    %v906 = vld [vmem:[#allocation6 + $0x786] ss:$0 sm:$0xff]
    %v907 = vld [vmem:[#allocation6 + $0x787] ss:$0 sm:$0xff]
    %v908 = vsel %vm397, %v904, 0.0
    %909 = vadd.xlane.f32.xlu0 %v908
    %v910 = vpop.xlane.xlu0 %909
    %v911 = vsel %vm397, %v905, 0.0
    %912 = vadd.xlane.f32.xlu0 %v911
    %v913 = vpop.xlane.xlu0 %912
    %v914 = vmul.f32 %v910, %v787
    %v915 = vmul.f32 %v913, %v787
    %v916 = vsub.f32 %v904, %v914
    %v917 = vsub.f32 %v905, %v915
    %v918 = vmul.f32 %v916, %v916
    %v919 = vmul.f32 %v917, %v917
    %v920 = vsel %vm397, %v918, 0.0
    %921 = vadd.xlane.f32.xlu0 %v920
    %v922 = vpop.xlane.xlu0 %921
    %v923 = vsel %vm397, %v919, 0.0
    %924 = vadd.xlane.f32.xlu0 %v923
    %v925 = vpop.xlane.xlu0 %924
    %v926 = vmul.f32 %v922, %v787
    %v927 = vmul.f32 %v925, %v787
    %v928 = vadd.f32 %v926, 1e-05
    %v929 = vadd.f32 %v927, 1e-05
    %v930 = vrsqrt.pop %v928
    %v931 = vmul.f32 %v930, %v928
    %v932 = vmul.f32 %v931, %v930
    %v933 = vmul.f32 0.5, %v932
    %v934 = vsub.f32 1.5, %v933
    %v935 = vmul.f32 %v930, %v934
    %vm936 = vweird.f32 %v928
    %vm937 = vweird.f32 %v930
    %vm938 = vmor %vm936, %vm937
    %v939 = vsel %vm938, %v930, %v935
    %v940 = vrsqrt.pop %v929
    %v941 = vmul.f32 %v940, %v929
    %v942 = vmul.f32 %v941, %v940
    %v943 = vmul.f32 0.5, %v942
    %v944 = vsub.f32 1.5, %v943
    %v945 = vmul.f32 %v940, %v944
    %vm946 = vweird.f32 %v929
    %vm947 = vweird.f32 %v940
    %vm948 = vmor %vm946, %vm947
    %v949 = vsel %vm948, %v940, %v945
    %v950 = vmul.f32 %v916, %v939
    %v951 = vmul.f32 %v917, %v949
    %v952 = vmul.f32 %v950, %v906
    %v953 = vmul.f32 %v951, %v906
    %v954 = vadd.f32 %v952, %v907
    %v955 = vadd.f32 %v953, %v907
    %v956 = vld [vmem:[#allocation6 + $0x790] sm:$0xff]
    %v957 = vld [vmem:[#allocation6 + $0x7a0] sm:$0xff]
    %v958 = vld [vmem:[#allocation6 + $0x7b0] sm:$0xff]
    %v959 = vld [vmem:[#allocation6 + $0x7c0] sm:$0xff]
    %v960 = vld [vmem:[#allocation6 + $0x8d0] ss:$0 sm:$0xff]
    %v962 = vsel %vm397, %v954, 0
    %v965 = vsel %vm397, %v955, 0
    %967 = vmatpush.msra.mxu0 0.0
    %968 = vmatpush.msra.mxu0 0.0
    %969 = vmatpush.msra.mxu0 0.0
    %970 = vmatpush.msra.mxu0 0.0
    %971 = vmatpush.msra.mxu0 0.0
    %972 = vmatpush.msra.mxu0 0.0
    %973 = vmatpush.msra.mxu0 0.0
    %974 = vmatpush.msra.mxu0 0.0
    %975 = vmatpush.msra.mxu0 0.0
    %976 = vmatpush.msra.mxu0 0.0
    %977 = vmatpush.msra.mxu0 0.0
    %978 = vmatpush.msra.mxu0 0.0
    %979 = vmatpush.msra.mxu0 %v959
    %980 = vmatpush.msra.mxu0 %v958
    %981 = vmatpush.msra.mxu0 %v957
    %982 = vmatpush.msra.mxu0 %v956
    %983 = vmatmul.f32.gmra.mxu0 %v962
    %v984 = vpop.f32.mrf.mxu0
    %v985 = vadd.f32 %v960, %v984
    %986 = vmatmul.f32.gmra.mxu0 %v965
    %v987 = vpop.f32.mrf.mxu0
    %v988 = vadd.f32 %v960, %v987
    %989 = vdwg.mxu0
    %992 = vrot.lane.b32.xlu0 %v985, 96
    %v993 = vpop.permute.xlu0 %992
    %994 = vrot.lane.b32.xlu0 %v988, 96
    %v995 = vpop.permute.xlu0 %994
    %998 = vmatpush.msra.mxu0 0.0
    %999 = vmatpush.msra.mxu0 0.0
    %1000 = vmatpush.msra.mxu0 0.0
    %1001 = vmatpush.msra.mxu0 0.0
    %1002 = vmatpush.msra.mxu0 0.0
    %1003 = vmatpush.msra.mxu0 0.0
    %1004 = vmatpush.msra.mxu0 0.0
    %1005 = vmatpush.msra.mxu0 0.0
    %1006 = vmatpush.msra.mxu0 0.0
    %1007 = vmatpush.msra.mxu0 0.0
    %1008 = vmatpush.msra.mxu0 0.0
    %1009 = vmatpush.msra.mxu0 0.0
    %1010 = vmatpush.msra.mxu0 0.0
    %1011 = vmatpush.msra.mxu0 0.0
    %1012 = vmatpush.msra.mxu0 %v995
    %1013 = vmatpush.msra.mxu0 %v993
    %1014 = vmatmul.f32.gmra.mxu0 %v436
    %v1015 = vpop.f32.mrf.mxu0
    %v1016 = vadd.f32 0.0, %v1015
    %1017 = vmatmul.f32.gmra.mxu0 %v439
    %v1018 = vpop.f32.mrf.mxu0
    %v1019 = vadd.f32 0.0, %v1018
    %1020 = vmatmul.f32.gmra.mxu0 %v442
    %v1021 = vpop.f32.mrf.mxu0
    %v1022 = vadd.f32 0.0, %v1021
    %1023 = vmatmul.f32.gmra.mxu0 %v445
    %v1024 = vpop.f32.mrf.mxu0
    %v1025 = vadd.f32 0.0, %v1024
    %1026 = vmatmul.f32.gmra.mxu0 %v448
    %v1027 = vpop.f32.mrf.mxu0
    %v1028 = vadd.f32 0.0, %v1027
    %1029 = vmatmul.f32.gmra.mxu0 %v451
    %v1030 = vpop.f32.mrf.mxu0
    %v1031 = vadd.f32 0.0, %v1030
    %1032 = vmatmul.f32.gmra.mxu0 %v454
    %v1033 = vpop.f32.mrf.mxu0
    %v1034 = vadd.f32 0.0, %v1033
    %1035 = vmatmul.f32.gmra.mxu0 %v457
    %v1036 = vpop.f32.mrf.mxu0
    %v1037 = vadd.f32 0.0, %v1036
    %1038 = vdwg.mxu0
    %v1039 = vmul.f32 %v1016, %v72
    %v1040 = vmul.f32 %v1019, %v73
    %v1041 = vmul.f32 %v1022, %v74
    %v1042 = vmul.f32 %v1025, %v75
    %v1043 = vmul.f32 %v1028, %v76
    %v1044 = vmul.f32 %v1031, %v77
    %v1045 = vmul.f32 %v1034, %v78
    %v1046 = vmul.f32 %v1037, %v79
    %v1047 = vmul.f32 %v1016, %v517
    %v1048 = vmul.f32 %v1019, %v519
    %v1049 = vmul.f32 %v1022, %v521
    %v1050 = vmul.f32 %v1025, %v523
    %v1051 = vmul.f32 %v1028, %v525
    %v1052 = vmul.f32 %v1031, %v527
    %v1053 = vmul.f32 %v1034, %v529
    %v1054 = vmul.f32 %v1037, %v531
    %v1055 = vsel %vm397, %v985, 0
    %v1057 = vsel %vm397, %v988, 0
    %v1060 = vsel %vm397, %v1039, 0
    %v1063 = vsel %vm397, %v1040, 0
    %v1066 = vsel %vm397, %v1041, 0
    %v1069 = vsel %vm397, %v1042, 0
    %v1072 = vsel %vm397, %v1043, 0
    %v1075 = vsel %vm397, %v1044, 0
    %v1078 = vsel %vm397, %v1045, 0
    %v1081 = vsel %vm397, %v1046, 0
    %1083 = vmatpush.xpose.msra.mxu0 0.0
    %1084 = vmatpush.xpose.msra.mxu0 0.0
    %1085 = vmatpush.xpose.msra.mxu0 0.0
    %1086 = vmatpush.xpose.msra.mxu0 0.0
    %1087 = vmatpush.xpose.msra.mxu0 0.0
    %1088 = vmatpush.xpose.msra.mxu0 0.0
    %1089 = vmatpush.xpose.msra.mxu0 0.0
    %1090 = vmatpush.xpose.msra.mxu0 0.0
    %1091 = vmatpush.xpose.msra.mxu0 %v1081
    %1092 = vmatpush.xpose.msra.mxu0 %v1078
    %1093 = vmatpush.xpose.msra.mxu0 %v1075
    %1094 = vmatpush.xpose.msra.mxu0 %v1072
    %1095 = vmatpush.xpose.msra.mxu0 %v1069
    %1096 = vmatpush.xpose.msra.mxu0 %v1066
    %1097 = vmatpush.xpose.msra.mxu0 %v1063
    %1098 = vmatpush.xpose.msra.mxu0 %v1060
    %1099 = vmatmul.f32.gmra.mxu0 %v1055
    %v1100 = vpop.f32.mrf.mxu0
    %v1101 = vadd.f32 %v123, %v1100
    %1102 = vmatmul.f32.gmra.mxu0 %v1057
    %v1103 = vpop.f32.mrf.mxu0
    %v1104 = vadd.f32 %v124, %v1103
    %1105 = vdwg.mxu0
    %v1106 = vsel %vm599, %v1101, -inf
    %1107 = vmax.xlane.f32.xlu0 %v1106
    %v1108 = vpop.xlane.xlu0 %1107
    %v1109 = vsel %vm599, %v1104, -inf
    %1110 = vmax.xlane.f32.xlu0 %v1109
    %v1111 = vpop.xlane.xlu0 %1110
    %v1112 = vsub.f32 %v1101, %v1108
    %v1113 = vsub.f32 %v1104, %v1111
    %v1114 = vmul.f32 %v1112, 1.442695
    %v1115 = vpow.pop %v1114
    %v1116 = vmul.f32 %v1113, 1.442695
    %v1117 = vpow.pop %v1116
    %v1119 = vsel %vm599, %v1115, 0
    %v1122 = vsel %vm599, %v1117, 0
    %1124 = vmatpush.msra.mxu0 0.0
    %1125 = vmatpush.msra.mxu0 0.0
    %1126 = vmatpush.msra.mxu0 0.0
    %1127 = vmatpush.msra.mxu0 0.0
    %1128 = vmatpush.msra.mxu0 0.0
    %1129 = vmatpush.msra.mxu0 0.0
    %1130 = vmatpush.msra.mxu0 0.0
    %1131 = vmatpush.msra.mxu0 0.0
    %1132 = vmatpush.msra.mxu0 %v87
    %1133 = vmatpush.msra.mxu0 %v86
    %1134 = vmatpush.msra.mxu0 %v85
    %1135 = vmatpush.msra.mxu0 %v84
    %1136 = vmatpush.msra.mxu0 %v83
    %1137 = vmatpush.msra.mxu0 %v82
    %1138 = vmatpush.msra.mxu0 %v81
    %1139 = vmatpush.msra.mxu0 %v80
    %1140 = vmatmul.f32.gmra.mxu0 %v1119
    %v1141 = vpop.f32.mrf.mxu0
    %v1142 = vadd.f32 0.0, %v1141
    %1143 = vmatmul.f32.gmra.mxu0 %v1122
    %v1144 = vpop.f32.mrf.mxu0
    %v1145 = vadd.f32 0.0, %v1144
    %1146 = vdwg.mxu0
    %v1147 = vmax.f32 %v1142, 1e-30
    %v1148 = vmax.f32 %v1145, 1e-30
    %v1149 = vrcp.pop %v1147
    %v1150 = vrcp.pop %v1148
    %v1152 = vsel %vm207, %v1149, 0
    %v1155 = vsel %vm207, %v1150, 0
    %1157 = vmatpush.msra.mxu0 0.0
    %1158 = vmatpush.msra.mxu0 0.0
    %1159 = vmatpush.msra.mxu0 0.0
    %1160 = vmatpush.msra.mxu0 0.0
    %1161 = vmatpush.msra.mxu0 0.0
    %1162 = vmatpush.msra.mxu0 0.0
    %1163 = vmatpush.msra.mxu0 0.0
    %1164 = vmatpush.msra.mxu0 0.0
    %1165 = vmatpush.msra.mxu0 0.0
    %1166 = vmatpush.msra.mxu0 0.0
    %1167 = vmatpush.msra.mxu0 0.0
    %1168 = vmatpush.msra.mxu0 0.0
    %1169 = vmatpush.msra.mxu0 0.0
    %1170 = vmatpush.msra.mxu0 0.0
    %1171 = vmatpush.msra.mxu0 0.0
    %1172 = vmatpush.msra.mxu0 %v88
    %1173 = vmatmul.f32.gmra.mxu0 %v1152
    %v1174 = vpop.f32.mrf.mxu0
    %v1175 = vadd.f32 0.0, %v1174
    %1176 = vmatmul.f32.gmra.mxu0 %v1155
    %v1177 = vpop.f32.mrf.mxu0
    %v1178 = vadd.f32 0.0, %v1177
    %1179 = vdwg.mxu0
    %v1180 = vmul.f32 %v1115, %v1175
    %v1181 = vmul.f32 %v1117, %v1178
    %1190 = vrot.lane.b32.xlu0 %v1047, 96
    %v1191 = vpop.permute.xlu0 %1190
    %1192 = vrot.lane.b32.xlu0 %v1048, 96
    %v1193 = vpop.permute.xlu0 %1192
    %1194 = vrot.lane.b32.xlu0 %v1049, 96
    %v1195 = vpop.permute.xlu0 %1194
    %1196 = vrot.lane.b32.xlu0 %v1050, 96
    %v1197 = vpop.permute.xlu0 %1196
    %1198 = vrot.lane.b32.xlu0 %v1051, 96
    %v1199 = vpop.permute.xlu0 %1198
    %1200 = vrot.lane.b32.xlu0 %v1052, 96
    %v1201 = vpop.permute.xlu0 %1200
    %1202 = vrot.lane.b32.xlu0 %v1053, 96
    %v1203 = vpop.permute.xlu0 %1202
    %1204 = vrot.lane.b32.xlu0 %v1054, 96
    %v1205 = vpop.permute.xlu0 %1204
    %v1215 = vsel %vm599, %v1180, 0
    %v1218 = vsel %vm599, %v1181, 0
    %1220 = vmatpush.msra.mxu0 0.0
    %1221 = vmatpush.msra.mxu0 0.0
    %1222 = vmatpush.msra.mxu0 0.0
    %1223 = vmatpush.msra.mxu0 0.0
    %1224 = vmatpush.msra.mxu0 0.0
    %1225 = vmatpush.msra.mxu0 0.0
    %1226 = vmatpush.msra.mxu0 0.0
    %1227 = vmatpush.msra.mxu0 0.0
    %1228 = vmatpush.msra.mxu0 %v1205
    %1229 = vmatpush.msra.mxu0 %v1203
    %1230 = vmatpush.msra.mxu0 %v1201
    %1231 = vmatpush.msra.mxu0 %v1199
    %1232 = vmatpush.msra.mxu0 %v1197
    %1233 = vmatpush.msra.mxu0 %v1195
    %1234 = vmatpush.msra.mxu0 %v1193
    %1235 = vmatpush.msra.mxu0 %v1191
    %1236 = vmatmul.f32.gmra.mxu0 %v1215
    %v1237 = vpop.f32.mrf.mxu0
    %v1238 = vadd.f32 0.0, %v1237
    %1239 = vmatmul.f32.gmra.mxu0 %v1218
    %v1240 = vpop.f32.mrf.mxu0
    %v1241 = vadd.f32 0.0, %v1240
    %1242 = vdwg.mxu0
    %v1243 = vld [vmem:[#allocation6 + $0x7d0] sm:$0xff]
    %v1244 = vld [vmem:[#allocation6 + $0x7e0] sm:$0xff]
    %v1245 = vld [vmem:[#allocation6 + $0x7f0] sm:$0xff]
    %v1246 = vld [vmem:[#allocation6 + $0x800] sm:$0xff]
    %v1247 = vld [vmem:[#allocation6 + $0x8d1] ss:$0 sm:$0xff]
    %v1249 = vsel %vm397, %v1238, 0
    %v1252 = vsel %vm397, %v1241, 0
    %1254 = vmatpush.msra.mxu0 0.0
    %1255 = vmatpush.msra.mxu0 0.0
    %1256 = vmatpush.msra.mxu0 0.0
    %1257 = vmatpush.msra.mxu0 0.0
    %1258 = vmatpush.msra.mxu0 0.0
    %1259 = vmatpush.msra.mxu0 0.0
    %1260 = vmatpush.msra.mxu0 0.0
    %1261 = vmatpush.msra.mxu0 0.0
    %1262 = vmatpush.msra.mxu0 0.0
    %1263 = vmatpush.msra.mxu0 0.0
    %1264 = vmatpush.msra.mxu0 0.0
    %1265 = vmatpush.msra.mxu0 0.0
    %1266 = vmatpush.msra.mxu0 %v1246
    %1267 = vmatpush.msra.mxu0 %v1245
    %1268 = vmatpush.msra.mxu0 %v1244
    %1269 = vmatpush.msra.mxu0 %v1243
    %1270 = vmatmul.f32.gmra.mxu0 %v1249
    %v1271 = vpop.f32.mrf.mxu0
    %v1272 = vadd.f32 %v1247, %v1271
    %1273 = vmatmul.f32.gmra.mxu0 %v1252
    %v1274 = vpop.f32.mrf.mxu0
    %v1275 = vadd.f32 %v1247, %v1274
    %1276 = vdwg.mxu0
    %v1277 = vadd.f32 %v954, %v1272
    %v1278 = vadd.f32 %v955, %v1275
    %v1279 = vld [vmem:[#allocation6 + $0x8d4] ss:$0 sm:$0xff]
    %v1280 = vld [vmem:[#allocation6 + $0x8d5] ss:$0 sm:$0xff]
    %v1281 = vsel %vm397, %v1277, 0.0
    %1282 = vadd.xlane.f32.xlu0 %v1281
    %v1283 = vpop.xlane.xlu0 %1282
    %v1284 = vsel %vm397, %v1278, 0.0
    %1285 = vadd.xlane.f32.xlu0 %v1284
    %v1286 = vpop.xlane.xlu0 %1285
    %v1287 = vmul.f32 %v1283, %v787
    %v1288 = vmul.f32 %v1286, %v787
    %v1289 = vsub.f32 %v1277, %v1287
    %v1290 = vsub.f32 %v1278, %v1288
    %v1291 = vmul.f32 %v1289, %v1289
    %v1292 = vmul.f32 %v1290, %v1290
    %v1293 = vsel %vm397, %v1291, 0.0
    %1294 = vadd.xlane.f32.xlu0 %v1293
    %v1295 = vpop.xlane.xlu0 %1294
    %v1296 = vsel %vm397, %v1292, 0.0
    %1297 = vadd.xlane.f32.xlu0 %v1296
    %v1298 = vpop.xlane.xlu0 %1297
    %v1299 = vmul.f32 %v1295, %v787
    %v1300 = vmul.f32 %v1298, %v787
    %v1301 = vadd.f32 %v1299, 1e-05
    %v1302 = vadd.f32 %v1300, 1e-05
    %v1303 = vrsqrt.pop %v1301
    %v1304 = vmul.f32 %v1303, %v1301
    %v1305 = vmul.f32 %v1304, %v1303
    %v1306 = vmul.f32 0.5, %v1305
    %v1307 = vsub.f32 1.5, %v1306
    %v1308 = vmul.f32 %v1303, %v1307
    %vm1309 = vweird.f32 %v1301
    %vm1310 = vweird.f32 %v1303
    %vm1311 = vmor %vm1309, %vm1310
    %v1312 = vsel %vm1311, %v1303, %v1308
    %v1313 = vrsqrt.pop %v1302
    %v1314 = vmul.f32 %v1313, %v1302
    %v1315 = vmul.f32 %v1314, %v1313
    %v1316 = vmul.f32 0.5, %v1315
    %v1317 = vsub.f32 1.5, %v1316
    %v1318 = vmul.f32 %v1313, %v1317
    %vm1319 = vweird.f32 %v1302
    %vm1320 = vweird.f32 %v1313
    %vm1321 = vmor %vm1319, %vm1320
    %v1322 = vsel %vm1321, %v1313, %v1318
    %v1323 = vmul.f32 %v1289, %v1312
    %v1324 = vmul.f32 %v1290, %v1322
    %v1325 = vmul.f32 %v1323, %v1279
    %v1326 = vmul.f32 %v1324, %v1279
    %v1327 = vadd.f32 %v1325, %v1280
    %v1328 = vadd.f32 %v1326, %v1280
    %v1329 = vld [vmem:[#allocation6 + $0x810] sm:$0xff]
    %v1330 = vld [vmem:[#allocation6 + $0x820] sm:$0xff]
    %v1331 = vld [vmem:[#allocation6 + $0x830] sm:$0xff]
    %v1332 = vld [vmem:[#allocation6 + $0x840] sm:$0xff]
    %v1333 = vld [vmem:[#allocation6 + $0x8d2] ss:$0 sm:$0xff]
    %v1335 = vsel %vm397, %v1327, 0
    %v1338 = vsel %vm397, %v1328, 0
    %1340 = vmatpush.msra.mxu0 0.0
    %1341 = vmatpush.msra.mxu0 0.0
    %1342 = vmatpush.msra.mxu0 0.0
    %1343 = vmatpush.msra.mxu0 0.0
    %1344 = vmatpush.msra.mxu0 0.0
    %1345 = vmatpush.msra.mxu0 0.0
    %1346 = vmatpush.msra.mxu0 0.0
    %1347 = vmatpush.msra.mxu0 0.0
    %1348 = vmatpush.msra.mxu0 0.0
    %1349 = vmatpush.msra.mxu0 0.0
    %1350 = vmatpush.msra.mxu0 0.0
    %1351 = vmatpush.msra.mxu0 0.0
    %1352 = vmatpush.msra.mxu0 %v1332
    %1353 = vmatpush.msra.mxu0 %v1331
    %1354 = vmatpush.msra.mxu0 %v1330
    %1355 = vmatpush.msra.mxu0 %v1329
    %1356 = vmatmul.f32.gmra.mxu0 %v1335
    %v1357 = vpop.f32.mrf.mxu0
    %v1358 = vadd.f32 %v1333, %v1357
    %1359 = vmatmul.f32.gmra.mxu0 %v1338
    %v1360 = vpop.f32.mrf.mxu0
    %v1361 = vadd.f32 %v1333, %v1360
    %1362 = vdwg.mxu0
    %v1363 = vmax.f32 %v1358, 0.0
    %v1364 = vmax.f32 %v1361, 0.0
    %v1365 = vld [vmem:[#allocation6 + $0x850] sm:$0xff]
    %v1366 = vld [vmem:[#allocation6 + $0x860] sm:$0xff]
    %v1367 = vld [vmem:[#allocation6 + $0x870] sm:$0xff]
    %v1368 = vld [vmem:[#allocation6 + $0x880] sm:$0xff]
    %v1369 = vld [vmem:[#allocation6 + $0x890] sm:$0xff]
    %v1370 = vld [vmem:[#allocation6 + $0x8a0] sm:$0xff]
    %v1371 = vld [vmem:[#allocation6 + $0x8b0] sm:$0xff]
    %v1372 = vld [vmem:[#allocation6 + $0x8c0] sm:$0xff]
    %v1373 = vld [vmem:[#allocation6 + $0x8d3] ss:$0 sm:$0xff]
    %v1375 = vsel %vm599, %v1363, 0
    %v1378 = vsel %vm599, %v1364, 0
    %1380 = vmatpush.msra.mxu0 0.0
    %1381 = vmatpush.msra.mxu0 0.0
    %1382 = vmatpush.msra.mxu0 0.0
    %1383 = vmatpush.msra.mxu0 0.0
    %1384 = vmatpush.msra.mxu0 0.0
    %1385 = vmatpush.msra.mxu0 0.0
    %1386 = vmatpush.msra.mxu0 0.0
    %1387 = vmatpush.msra.mxu0 0.0
    %1388 = vmatpush.msra.mxu0 %v1372
    %1389 = vmatpush.msra.mxu0 %v1371
    %1390 = vmatpush.msra.mxu0 %v1370
    %1391 = vmatpush.msra.mxu0 %v1369
    %1392 = vmatpush.msra.mxu0 %v1368
    %1393 = vmatpush.msra.mxu0 %v1367
    %1394 = vmatpush.msra.mxu0 %v1366
    %1395 = vmatpush.msra.mxu0 %v1365
    %1396 = vmatmul.f32.gmra.mxu0 %v1375
    %v1397 = vpop.f32.mrf.mxu0
    %v1398 = vadd.f32 %v1373, %v1397
    %1399 = vmatmul.f32.gmra.mxu0 %v1378
    %v1400 = vpop.f32.mrf.mxu0
    %v1401 = vadd.f32 %v1373, %v1400
    %1402 = vdwg.mxu0
    %v1403 = vadd.f32 %v1327, %v1398
    %v1404 = vadd.f32 %v1328, %v1401
    %v1405 = vld [vmem:[#allocation6 + $0x8d6] ss:$0 sm:$0xff]
    %v1406 = vld [vmem:[#allocation6 + $0x8d7] ss:$0 sm:$0xff]
    %v1407 = vsel %vm397, %v1403, 0.0
    %1408 = vadd.xlane.f32.xlu0 %v1407
    %v1409 = vpop.xlane.xlu0 %1408
    %v1410 = vsel %vm397, %v1404, 0.0
    %1411 = vadd.xlane.f32.xlu0 %v1410
    %v1412 = vpop.xlane.xlu0 %1411
    %v1413 = vmul.f32 %v1409, %v787
    %v1414 = vmul.f32 %v1412, %v787
    %v1415 = vsub.f32 %v1403, %v1413
    %v1416 = vsub.f32 %v1404, %v1414
    %v1417 = vmul.f32 %v1415, %v1415
    %v1418 = vmul.f32 %v1416, %v1416
    %v1419 = vsel %vm397, %v1417, 0.0
    %1420 = vadd.xlane.f32.xlu0 %v1419
    %v1421 = vpop.xlane.xlu0 %1420
    %v1422 = vsel %vm397, %v1418, 0.0
    %1423 = vadd.xlane.f32.xlu0 %v1422
    %v1424 = vpop.xlane.xlu0 %1423
    %v1425 = vmul.f32 %v1421, %v787
    %v1426 = vmul.f32 %v1424, %v787
    %v1427 = vadd.f32 %v1425, 1e-05
    %v1428 = vadd.f32 %v1426, 1e-05
    %v1429 = vrsqrt.pop %v1427
    %v1430 = vmul.f32 %v1429, %v1427
    %v1431 = vmul.f32 %v1430, %v1429
    %v1432 = vmul.f32 0.5, %v1431
    %v1433 = vsub.f32 1.5, %v1432
    %v1434 = vmul.f32 %v1429, %v1433
    %vm1435 = vweird.f32 %v1427
    %vm1436 = vweird.f32 %v1429
    %vm1437 = vmor %vm1435, %vm1436
    %v1438 = vsel %vm1437, %v1429, %v1434
    %v1439 = vrsqrt.pop %v1428
    %v1440 = vmul.f32 %v1439, %v1428
    %v1441 = vmul.f32 %v1440, %v1439
    %v1442 = vmul.f32 0.5, %v1441
    %v1443 = vsub.f32 1.5, %v1442
    %v1444 = vmul.f32 %v1439, %v1443
    %vm1445 = vweird.f32 %v1428
    %vm1446 = vweird.f32 %v1439
    %vm1447 = vmor %vm1445, %vm1446
    %v1448 = vsel %vm1447, %v1439, %v1444
    %v1449 = vmul.f32 %v1415, %v1438
    %v1450 = vmul.f32 %v1416, %v1448
    %v1451 = vmul.f32 %v1449, %v1405
    %v1452 = vmul.f32 %v1450, %v1405
    %v1453 = vadd.f32 %v1451, %v1406
    %v1454 = vadd.f32 %v1452, %v1406
    %v1456 = vsel %vm94, %v127, 0
    %1458 = vmatpush.msra.mxu0 0.0
    %1459 = vmatpush.msra.mxu0 0.0
    %1460 = vmatpush.msra.mxu0 0.0
    %1461 = vmatpush.msra.mxu0 0.0
    %1462 = vmatpush.msra.mxu0 0.0
    %1463 = vmatpush.msra.mxu0 0.0
    %1464 = vmatpush.msra.mxu0 0.0
    %1465 = vmatpush.msra.mxu0 0.0
    %1466 = vmatpush.msra.mxu0 0.0
    %1467 = vmatpush.msra.mxu0 0.0
    %1468 = vmatpush.msra.mxu0 0.0
    %1469 = vmatpush.msra.mxu0 0.0
    %1470 = vmatpush.msra.mxu0 0.0
    %1471 = vmatpush.msra.mxu0 0.0
    %1472 = vmatpush.msra.mxu0 %v1454
    %1473 = vmatpush.msra.mxu0 %v1453
    %1474 = vmatmul.f32.gmra.mxu0 %v1456
    %v1475 = vpop.f32.mrf.mxu0
    %v1476 = vadd.f32 0.0, %v1475
    %1477 = vdwg.mxu0
    %v1478 = vsel %vm94, %v127, 0.0
    %1479 = vadd.xlane.f32.xlu0 %v1478
    %v1480 = vpop.xlane.xlu0 %1479
    %v1481 = vmax.f32 %v1480, 1.0
    %v1482 = vmax.f32 %v1481, 1e-30
    %v1483 = vrcp.pop %v1482
    %v1484 = vmul.f32 %v1476, %v1483
    %v1485 = vld [vmem:[#allocation6 + $0x600] sm:$0xff]
    %v1486 = vld [vmem:[#allocation6 + $0x610] sm:$0xff]
    %v1487 = vld [vmem:[#allocation6 + $0x620] sm:$0xff]
    %v1488 = vld [vmem:[#allocation6 + $0x630] sm:$0xff]
    %v1489 = vld [vmem:[#allocation6 + $0x5f1] ss:$0 sm:$0xff]
    %v1491 = vsel %vm397, %v1484, 0
    %1493 = vmatpush.msra.mxu0 0.0
    %1494 = vmatpush.msra.mxu0 0.0
    %1495 = vmatpush.msra.mxu0 0.0
    %1496 = vmatpush.msra.mxu0 0.0
    %1497 = vmatpush.msra.mxu0 0.0
    %1498 = vmatpush.msra.mxu0 0.0
    %1499 = vmatpush.msra.mxu0 0.0
    %1500 = vmatpush.msra.mxu0 0.0
    %1501 = vmatpush.msra.mxu0 0.0
    %1502 = vmatpush.msra.mxu0 0.0
    %1503 = vmatpush.msra.mxu0 0.0
    %1504 = vmatpush.msra.mxu0 0.0
    %1505 = vmatpush.msra.mxu0 %v1488
    %1506 = vmatpush.msra.mxu0 %v1487
    %1507 = vmatpush.msra.mxu0 %v1486
    %1508 = vmatpush.msra.mxu0 %v1485
    %1509 = vmatmul.f32.gmra.mxu0 %v1491
    %v1510 = vpop.f32.mrf.mxu0
    %v1511 = vadd.f32 %v1489, %v1510
    %1512 = vdwg.mxu0
    %1513 = vmax.xlane.f32.xlu0 %v1511
    %v1514 = vpop.xlane.xlu0 %1513
    %v1515 = vsub.f32 %v1511, %v1514
    %v1516 = vmul.f32 %v1515, 1.442695
    %v1517 = vpow.pop %v1516
    %1518 = vadd.xlane.f32.xlu0 %v1517
    %v1519 = vpop.xlane.xlu0 %1518
    %v1520 = vrcp.pop %v1519
    %v1521 = vmul.f32 %v1519, %v1520
    %v1522 = vsub.f32 1.0, %v1521
    %v1523 = vmul.f32 %v1520, %v1522
    %v1524 = vadd.f32 %v1520, %v1523
    %vm1525 = vweird.f32 %v1519
    %vm1526 = vweird.f32 %v1520
    %vm1527 = vmor %vm1525, %vm1526
    %v1528 = vsel %vm1527, %v1520, %v1524
    %v1529 = vand.u32 2147483647, %v1519
    %vm1530 = vcmp.eq.f32.partialorder %v1529, 8.507059e+37
    %v1531 = vand.u32 %v1519, 2147483648
    %v1532 = vor.u32 1.1754944e-38, %v1531
    %v1533 = vsel %vm1530, %v1532, %v1528
    %v1534 = vmul.f32 %v1517, %v1533
    %1535 = vst [vmem:[%s3] sm:$0xff] %v1534
    // Predicated region
    $region26: #{forward.1} parent=1 // pred_check
      _
    $region27: #{forward.1} parent=1 // pred_check_branch
      %1537 = sbr.rel (0) target = $region29
    $region28: #{forward.1} parent=1 // pred_region
      _
    $region29: #{forward.1} parent=1 // pred_fallthru
      _
    // Predicated region
    $region30: #{forward.1} parent=1 // pred_check
      _
    $region31: #{forward.1} parent=1 // pred_check_branch
      %1539 = sbr.rel (0) target = $region33
    $region32: #{forward.1} parent=1 // pred_region
      _
    $region33: #{forward.1} parent=1 // pred_fallthru
      _
    %1540 = vsyncpa [#allocation3], 1
    %1541 = vsyncpa [#allocation5], 1

</llo_original>
